<compile_context>
chip_gen: v7x
topology: tpu7x:2x2x1
jax: 0.10.0
libtpu: 0.0.40
codegen_flags: <defaults>
</compile_context>

<pallas_src>
import functools
import math

import numpy as np

import jax
import jax.numpy as jnp
from jax.experimental import pallas as pl
from jax.experimental.pallas import tpu as pltpu


LANE = 128        # lane-dense padding for every feature axis
NODE_TILE = 256   # node rows per graph block (fills 256-deep MXU on v6e/v7x)
GRAPH_TILE = 16   # graphs per block (bf16-sublane friendly, f32-out friendly)


def _round_up(n, m):
    return ((n + m - 1) // m) * m


def _pad2d(a, rows, cols):
    out = jnp.zeros((rows, cols), a.dtype)
    return out.at[: a.shape[0], : a.shape[1]].set(a)


# ----------------------------------------------------------------------------
# Fused per-block kernel: GIN layers + global add-pool + projection head.
#   per layer l:  h <- relu( relu((adj @ h) @ W1_l + b1_l) @ W2_l + b2_l )
#                 pooled_l = P @ h
#                 proj_acc += pooled_l @ PW1_l        (concat folded in)
#   head:         y = relu(proj_acc + pb1) @ PW2 + pb2
# adj already contains the GIN self-term (A + (1+eps)*I).  All matmuls run on
# the MXU with bf16 inputs / f32 accumulation; bias adds and ReLUs stay f32.
# ----------------------------------------------------------------------------
def _gin_simclr_kernel(x_ref, adj_ref, pool_ref,
                       w1s_ref, b1s_ref, w2s_ref, b2s_ref,
                       pw1s_ref, pb1_ref, pw2_ref, pb2_ref,
                       o_ref, *, num_layers):
    f32 = jnp.float32
    bf16 = jnp.bfloat16

    h = x_ref[...]            # [NODE_TILE, H_pad]     bf16 (this block's nodes)
    adj = adj_ref[...]        # [NODE_TILE, NODE_TILE] bf16, already (A + I)
    pool = pool_ref[...]      # [GRAPH_TILE, NODE_TILE] bf16

    # Distinct output block per grid step -> plain value accumulator is fine.
    proj_acc = jnp.zeros((pool.shape[0], pw1s_ref.shape[2]), f32)

    for l in range(num_layers):            # static unroll (num_layers == 2)
        # GIN aggregation (self-term folded into adj): single MXU pass.
        h_in = jnp.dot(adj, h, preferred_element_type=f32).astype(bf16)

        # Per-layer MLP: Linear -> ReLU -> Linear, then the encoder's outer ReLU.
        z = jnp.dot(h_in, w1s_ref[l], preferred_element_type=f32) + b1s_ref[l]
        z = jnp.maximum(z, 0.0)
        hf = jnp.dot(z.astype(bf16), w2s_ref[l],
                     preferred_element_type=f32) + b2s_ref[l]
        hf = jnp.maximum(hf, 0.0)
        h = hf.astype(bf16)

        # Global add-pool FIRST (GRAPH_TILE << NODE_TILE), then the matching
        # per-layer slice of the proj head's first Linear (concat folded in).
        # Keep this ordering: pooling first makes the next matmul G x 128 x 128
        # instead of NODE_TILE x 128 x 128.
        pooled = jnp.dot(pool, h, preferred_element_type=f32)   # [GRAPH_TILE, H_pad]
        proj_acc = proj_acc + jnp.dot(pooled.astype(bf16), pw1s_ref[l],
                                      preferred_element_type=f32)

    # Projection head: Linear -> ReLU -> Linear.
    y = jnp.maximum(proj_acc + pb1_ref[...], 0.0)
    y = jnp.dot(y.astype(bf16), pw2_ref[...],
                preferred_element_type=f32) + pb2_ref[...]
    o_ref[...] = y.astype(o_ref.dtype)


def simclr_forward(enc_params, proj_params, x, edge_index, batch, num_graphs,
                   node_tile=NODE_TILE, graph_tile=GRAPH_TILE):
    """simclr.forward: y,_ = encoder(x, edge_index, batch); y = proj_head(y)."""
    n_nodes, in_dim = x.shape
    num_layers = len(enc_params)
    hidden = enc_params[0][2].shape[1]
    embed = hidden * num_layers

    H_pad = LANE
    E_pad = _round_up(embed, LANE)
    assert in_dim <= H_pad and hidden <= H_pad and embed <= E_pad

    bf16 = jnp.bfloat16

    # ------------------------------------------------------------------
    # Host-side block plan: pack whole graphs into fixed-size node tiles.
    # (Graph structure is host data; this is one-time preprocessing.)
    # ------------------------------------------------------------------
    batch_np = np.asarray(batch).astype(np.int64)
    src_np = np.asarray(edge_index[0]).astype(np.int64)
    dst_np = np.asarray(edge_index[1]).astype(np.int64)
    counts = np.bincount(batch_np, minlength=num_graphs)

    graph_block = np.zeros(num_graphs, np.int64)   # which tile a graph lives in
    graph_local = np.zeros(num_graphs, np.int64)   # graph slot within the tile
    graph_row0 = np.zeros(num_graphs, np.int64)    # first node row within the tile
    blk = used_nodes = used_graphs = 0
    for g in range(num_graphs):
        c = int(counts[g])
        # TODO(synk): graphs with > node_tile nodes need a multi-tile
        # (scalar-prefetch) path; not required for this module's usage.
        assert c <= node_tile, "graph larger than NODE_TILE"
        if used_graphs >= graph_tile or used_nodes + c > node_tile:
            blk += 1
            used_nodes = 0
            used_graphs = 0
        graph_block[g] = blk
        graph_local[g] = used_graphs
        graph_row0[g] = used_nodes
        used_graphs += 1
        used_nodes += c
    num_blocks = blk + 1

    ptr = graph_block * node_tile + graph_row0
    ptr = ptr.copy()
    node_row = np.zeros(n_nodes, np.int64)         # packed row of each node
    for i in range(n_nodes):
        g = int(batch_np[i])
        node_row[i] = ptr[g]
        ptr[g] += 1
    node_blk = graph_block[batch_np]
    node_loc = node_row - node_blk * node_tile

    # ------------------------------------------------------------------
    # Device-side operand construction, directly in bf16 (no f32 detour).
    # ------------------------------------------------------------------
    node_row_j = jnp.asarray(node_row, jnp.int32)
    node_blk_j = jnp.asarray(node_blk, jnp.int32)
    node_loc_j = jnp.asarray(node_loc, jnp.int32)

    x_feat = jnp.zeros((n_nodes, H_pad), bf16).at[:, :in_dim].set(x.astype(bf16))
    x_packed = jnp.zeros((num_blocks * node_tile, H_pad), bf16
                         ).at[node_row_j].set(x_feat)

    e_blk = jnp.asarray(graph_block[batch_np[dst_np]], jnp.int32)
    e_row = jnp.asarray(node_row[dst_np] - graph_block[batch_np[dst_np]] * node_tile,
                        jnp.int32)
    e_col = jnp.asarray(node_row[src_np] - graph_block[batch_np[src_np]] * node_tile,
                        jnp.int32)

    # Block-diagonal adjacency with the GIN self-term folded in: A + (1+eps)*I, eps=0.
    adj_blocks = jnp.zeros((num_blocks, node_tile, node_tile), bf16)
    adj_blocks = adj_blocks.at[e_blk, e_row, e_col].add(1.0)
    adj_blocks = adj_blocks.at[node_blk_j, node_loc_j, node_loc_j].add(1.0)

    # Block-local global-add-pool operator.
    pool_blocks = jnp.zeros((num_blocks, graph_tile, node_tile), bf16)
    pool_blocks = pool_blocks.at[
        node_blk_j, jnp.asarray(graph_local[batch_np], jnp.int32), node_loc_j
    ].set(1.0)

    # Pad encoder weights to a common [H_pad, H_pad] shape; biases stay f32.
    w1s, b1s, w2s, b2s = [], [], [], []
    for (w1, b1, w2, b2) in enc_params:
        w1s.append(_pad2d(w1, H_pad, H_pad))
        b1s.append(_pad2d(b1.reshape(1, -1), 1, H_pad))
        w2s.append(_pad2d(w2, H_pad, H_pad))
        b2s.append(_pad2d(b2.reshape(1, -1), 1, H_pad))
    w1s = jnp.stack(w1s).astype(bf16)          # [L, H_pad, H_pad] bf16
    b1s = jnp.stack(b1s)                       # [L, 1, H_pad]     f32
    w2s = jnp.stack(w2s).astype(bf16)
    b2s = jnp.stack(b2s)

    pw1, pb1, pw2, pb2 = proj_params
    # Split the proj head's first Linear per encoder layer (concat folded in).
    pw1s = jnp.stack([
        _pad2d(pw1[l * hidden:(l + 1) * hidden, :], H_pad, E_pad)
        for l in range(num_layers)
    ]).astype(bf16)                            # [L, H_pad, E_pad]
    pb1_p = _pad2d(pb1.reshape(1, -1), 1, E_pad)
    pw2_p = _pad2d(pw2, E_pad, E_pad).astype(bf16)
    pb2_p = _pad2d(pb2.reshape(1, -1), 1, E_pad)

    operands = (x_packed, adj_blocks, pool_blocks,
                w1s, b1s, w2s, b2s, pw1s, pb1_p, pw2_p, pb2_p)

    flops = num_blocks * (num_layers * (
        2 * node_tile * node_tile * H_pad        # adjacency matmul
        + 2 * 2 * node_tile * H_pad * H_pad      # two MLP matmuls
        + 2 * graph_tile * node_tile * H_pad     # pooling matmul
        + 2 * graph_tile * H_pad * E_pad         # proj-head partial matmul
    ) + 2 * graph_tile * E_pad * E_pad)          # proj-head second matmul
    bytes_accessed = sum(int(a.size) * a.dtype.itemsize for a in operands) \
        + num_blocks * graph_tile * E_pad * 4

    kernel = functools.partial(_gin_simclr_kernel, num_layers=num_layers)
    out = pl.pallas_call(
        kernel,
        out_shape=jax.ShapeDtypeStruct((num_blocks * graph_tile, E_pad),
                                       jnp.float32),
        grid=(num_blocks,),
        in_specs=[
            pl.BlockSpec((node_tile, H_pad), lambda b: (b, 0)),                # packed node feats
            pl.BlockSpec((None, node_tile, node_tile), lambda b: (b, 0, 0)),   # block-diag adj (+I)
            pl.BlockSpec((None, graph_tile, node_tile), lambda b: (b, 0, 0)),  # block-local pool
            pl.BlockSpec((num_layers, H_pad, H_pad), lambda b: (0, 0, 0)),     # w1s (grid-invariant)
            pl.BlockSpec((num_layers, 1, H_pad), lambda b: (0, 0, 0)),         # b1s
            pl.BlockSpec((num_layers, H_pad, H_pad), lambda b: (0, 0, 0)),     # w2s
            pl.BlockSpec((num_layers, 1, H_pad), lambda b: (0, 0, 0)),         # b2s
            pl.BlockSpec((num_layers, H_pad, E_pad), lambda b: (0, 0, 0)),     # pw1s
            pl.BlockSpec((1, E_pad), lambda b: (0, 0)),                        # pb1
            pl.BlockSpec((E_pad, E_pad), lambda b: (0, 0)),                    # pw2
            pl.BlockSpec((1, E_pad), lambda b: (0, 0)),                        # pb2
        ],
        out_specs=pl.BlockSpec((graph_tile, E_pad), lambda b: (b, 0)),
        compiler_params=pltpu.CompilerParams(
            # Independent graph blocks -> megacore-parallel on v7x (2 TCs);
            # harmless on v5e/v6e (1 TC).
            dimension_semantics=("parallel",),
            # Per-step footprint is ~1 MiB (adj block 128 KiB bf16); 32 MiB is
            # documented headroom (safe on v5e/v6e/v7x) if NODE_TILE is raised.
            vmem_limit_bytes=32 * 1024 * 1024),
        cost_estimate=pl.CostEstimate(
            flops=int(flops), transcendentals=0,
            bytes_accessed=int(bytes_accessed)),
    )(*operands)

    # Gather graphs back into their original order and strip padding.
    out_rows = jnp.asarray(graph_block * graph_tile + graph_local, jnp.int32)
    return out[out_rows][:, :embed]


# ----------------------------------------------------------------------------
# Deterministic parameter init (matches init_emb: xavier_uniform W, zero bias)
# ----------------------------------------------------------------------------
def xavier_uniform(key, fan_in, fan_out):
    bound = math.sqrt(6.0 / (fan_in + fan_out))
    # stored [in, out] so the kernel computes x @ W  (== x @ W_torch.T)
    return jax.random.uniform(
        key, (fan_in, fan_out), dtype=jnp.float32, minval=-bound, maxval=bound)


def make_linear(key, fan_in, fan_out):
    return xavier_uniform(key, fan_in, fan_out), jnp.zeros((fan_out,), jnp.float32)


# ----------------------------------------------------------------------------
# Pure-JAX f32 reference (same math, no padding/bf16) for a sanity check.
# ----------------------------------------------------------------------------
def reference_forward(enc_params, proj_params, x, edge_index, batch, num_graphs):
    src, dst = edge_index[0], edge_index[1]
    n = x.shape[0]
    h = x
    pooled = []
    for (w1, b1, w2, b2) in enc_params:
        agg = jax.ops.segment_sum(h[src], dst, num_segments=n)
        h = jnp.maximum((h + agg) @ w1 + b1, 0.0) @ w2 + b2
        h = jnp.maximum(h, 0.0)
        pooled.append(jax.ops.segment_sum(h, batch, num_segments=num_graphs))
    y = jnp.concatenate(pooled, axis=1)
    pw1, pb1, pw2, pb2 = proj_params
    return jnp.maximum(y @ pw1 + pb1, 0.0) @ pw2 + pb2


if __name__ == "__main__":
    key = jax.random.PRNGKey(0)

    # Small deterministic problem consistent with the module; 20 graphs spans
    # 2 graph blocks (GRAPH_TILE=16), exercising the multi-step grid path.
    in_dim = 8
    hidden_dim = 32
    num_layers = 2                      # args.encoder == 'GIN'
    embedding_dim = hidden_dim * num_layers
    num_graphs = 20
    nodes_per_graph = 6
    n_nodes = num_graphs * nodes_per_graph

    key, kx = jax.random.split(key)
    x = jax.random.normal(kx, (n_nodes, in_dim), dtype=jnp.float32)

    # Ring edges within each graph (both directions), deterministic.
    src_list, dst_list = [], []
    for g in range(num_graphs):
        base = g * nodes_per_graph
        for i in range(nodes_per_graph):
            a = base + i
            b = base + (i + 1) % nodes_per_graph
            src_list += [a, b]
            dst_list += [b, a]
    edge_index = jnp.array([src_list, dst_list], dtype=jnp.int32)
    batch = jnp.repeat(jnp.arange(num_graphs, dtype=jnp.int32), nodes_per_graph)

    # Encoder (GIN) parameters: per-layer MLP  Linear -> ReLU -> Linear
    enc_params = []
    d_in = in_dim
    for _ in range(num_layers):
        key, k1, k2 = jax.random.split(key, 3)
        w1, b1 = make_linear(k1, d_in, hidden_dim)
        w2, b2 = make_linear(k2, hidden_dim, hidden_dim)
        enc_params.append((w1, b1, w2, b2))
        d_in = hidden_dim

    # Projection head: Linear(D, D) -> ReLU -> Linear(D, D), D = embedding_dim
    key, k1, k2 = jax.random.split(key, 3)
    pw1, pb1 = make_linear(k1, embedding_dim, embedding_dim)
    pw2, pb2 = make_linear(k2, embedding_dim, embedding_dim)
    proj_params = (pw1, pb1, pw2, pb2)

    y = simclr_forward(enc_params, proj_params, x, edge_index, batch, num_graphs)
    y = jax.block_until_ready(y)

    assert y.shape == (num_graphs, embedding_dim)
    assert bool(jnp.all(jnp.isfinite(y)))

    # Check against the f32 reference (kernel uses bf16 MXU inputs -> loose tol).
    y_ref = reference_forward(enc_params, proj_params, x, edge_index, batch,
                              num_graphs)
    err = float(jnp.max(jnp.abs(y - y_ref)) / (jnp.max(jnp.abs(y_ref)) + 1e-6))
    assert err < 5e-2, f"normalized max error too large: {err}"

    print("KERNEL_OK")
</pallas_src>

<mosaic_0001>
module attributes {stable_mosaic.version = 11 : i64} {
  func.func @_gin_simclr_kernel(%arg0: i32, %arg1: memref<256x128xbf16, #tpu.memory_space<vmem>>, %arg2: memref<1x256x256xbf16, #tpu.memory_space<vmem>>, %arg3: memref<1x16x256xbf16, #tpu.memory_space<vmem>>, %arg4: memref<2x128x128xbf16, #tpu.memory_space<vmem>>, %arg5: memref<2x1x128xf32, #tpu.memory_space<vmem>>, %arg6: memref<2x128x128xbf16, #tpu.memory_space<vmem>>, %arg7: memref<2x1x128xf32, #tpu.memory_space<vmem>>, %arg8: memref<2x128x128xbf16, #tpu.memory_space<vmem>>, %arg9: memref<1x128xf32, #tpu.memory_space<vmem>>, %arg10: memref<128x128xbf16, #tpu.memory_space<vmem>>, %arg11: memref<1x128xf32, #tpu.memory_space<vmem>>, %arg12: memref<16x128xf32, #tpu.memory_space<vmem>>) attributes {dimension_semantics = [#tpu.dimension_semantics<parallel>], iteration_bounds = array<i64: 2>, scalar_prefetch = 0 : i64, scratch_operands = 0 : i64, tpu.core_type = #tpu.core_type<tc>, window_params = [{transform_indices = @transform_0, window_bounds = array<i64: 256, 128>}, {transform_indices = @transform_1, window_bounds = array<i64: 1, 256, 256>}, {transform_indices = @transform_2, window_bounds = array<i64: 1, 16, 256>}, {pipeline_mode = #tpu.pipeline_mode<synchronous>, transform_indices = @transform_3, window_bounds = array<i64: 2, 128, 128>}, {pipeline_mode = #tpu.pipeline_mode<synchronous>, transform_indices = @transform_4, window_bounds = array<i64: 2, 1, 128>}, {pipeline_mode = #tpu.pipeline_mode<synchronous>, transform_indices = @transform_5, window_bounds = array<i64: 2, 128, 128>}, {pipeline_mode = #tpu.pipeline_mode<synchronous>, transform_indices = @transform_6, window_bounds = array<i64: 2, 1, 128>}, {pipeline_mode = #tpu.pipeline_mode<synchronous>, transform_indices = @transform_7, window_bounds = array<i64: 2, 128, 128>}, {pipeline_mode = #tpu.pipeline_mode<synchronous>, transform_indices = @transform_8, window_bounds = array<i64: 1, 128>}, {pipeline_mode = #tpu.pipeline_mode<synchronous>, transform_indices = @transform_9, window_bounds = array<i64: 128, 128>}, {pipeline_mode = #tpu.pipeline_mode<synchronous>, transform_indices = @transform_10, window_bounds = array<i64: 1, 128>}, {transform_indices = @transform_11, window_bounds = array<i64: 16, 128>}]} {
    %c0 = arith.constant 0 : index
    %c0_0 = arith.constant 0 : index
    %0 = vector.load %arg1[%c0, %c0_0] : memref<256x128xbf16, #tpu.memory_space<vmem>>, vector<256x128xbf16>
    %c0_1 = arith.constant 0 : index
    %c0_2 = arith.constant 0 : index
    %c0_3 = arith.constant 0 : index
    %1 = vector.load %arg2[%c0_1, %c0_2, %c0_3] : memref<1x256x256xbf16, #tpu.memory_space<vmem>>, vector<1x256x256xbf16>
    %2 = vector.shape_cast %1 : vector<1x256x256xbf16> to vector<256x256xbf16>
    %c0_4 = arith.constant 0 : index
    %c0_5 = arith.constant 0 : index
    %c0_6 = arith.constant 0 : index
    %3 = vector.load %arg3[%c0_4, %c0_5, %c0_6] : memref<1x16x256xbf16, #tpu.memory_space<vmem>>, vector<1x16x256xbf16>
    %4 = vector.shape_cast %3 : vector<1x16x256xbf16> to vector<16x256xbf16>
    %cst = arith.constant 0.000000e+00 : f32
    %5 = vector.broadcast %cst : f32 to vector<16x128xf32>
    %cst_7 = arith.constant dense<0.000000e+00> : vector<256x128xf32>
    %6 = tpu.matmul %2, %0, %cst_7 {dimension_numbers = #tpu.dot_dimension_numbers<[1], [0], [0], [1], [0, 0, 1, 1], [], []>} : vector<256x256xbf16>, vector<256x128xbf16>, vector<256x128xf32> -> vector<256x128xf32>
    %7 = arith.truncf %6 : vector<256x128xf32> to vector<256x128xbf16>
    %c0_8 = arith.constant 0 : index
    %c0_9 = arith.constant 0 : index
    %c0_10 = arith.constant 0 : index
    %8 = vector.load %arg4[%c0_8, %c0_9, %c0_10] : memref<2x128x128xbf16, #tpu.memory_space<vmem>>, vector<1x128x128xbf16>
    %9 = vector.shape_cast %8 : vector<1x128x128xbf16> to vector<128x128xbf16>
    %cst_11 = arith.constant dense<0.000000e+00> : vector<256x128xf32>
    %10 = tpu.matmul %7, %9, %cst_11 {dimension_numbers = #tpu.dot_dimension_numbers<[1], [0], [0], [1], [0, 0, 1, 1], [], []>} : vector<256x128xbf16>, vector<128x128xbf16>, vector<256x128xf32> -> vector<256x128xf32>
    %c0_12 = arith.constant 0 : index
    %c0_13 = arith.constant 0 : index
    %c0_14 = arith.constant 0 : index
    %11 = vector.load %arg5[%c0_12, %c0_13, %c0_14] : memref<2x1x128xf32, #tpu.memory_space<vmem>>, vector<1x1x128xf32>
    %12 = vector.shape_cast %11 : vector<1x1x128xf32> to vector<1x128xf32>
    %13 = vector.broadcast %12 : vector<1x128xf32> to vector<256x128xf32>
    %14 = arith.addf %10, %13 : vector<256x128xf32>
    %cst_15 = arith.constant 0.000000e+00 : f32
    %15 = vector.broadcast %cst_15 : f32 to vector<256x128xf32>
    %16 = arith.maximumf %14, %15 : vector<256x128xf32>
    %17 = arith.truncf %16 : vector<256x128xf32> to vector<256x128xbf16>
    %c0_16 = arith.constant 0 : index
    %c0_17 = arith.constant 0 : index
    %c0_18 = arith.constant 0 : index
    %18 = vector.load %arg6[%c0_16, %c0_17, %c0_18] : memref<2x128x128xbf16, #tpu.memory_space<vmem>>, vector<1x128x128xbf16>
    %19 = vector.shape_cast %18 : vector<1x128x128xbf16> to vector<128x128xbf16>
    %cst_19 = arith.constant dense<0.000000e+00> : vector<256x128xf32>
    %20 = tpu.matmul %17, %19, %cst_19 {dimension_numbers = #tpu.dot_dimension_numbers<[1], [0], [0], [1], [0, 0, 1, 1], [], []>} : vector<256x128xbf16>, vector<128x128xbf16>, vector<256x128xf32> -> vector<256x128xf32>
    %c0_20 = arith.constant 0 : index
    %c0_21 = arith.constant 0 : index
    %c0_22 = arith.constant 0 : index
    %21 = vector.load %arg7[%c0_20, %c0_21, %c0_22] : memref<2x1x128xf32, #tpu.memory_space<vmem>>, vector<1x1x128xf32>
    %22 = vector.shape_cast %21 : vector<1x1x128xf32> to vector<1x128xf32>
    %23 = vector.broadcast %22 : vector<1x128xf32> to vector<256x128xf32>
    %24 = arith.addf %20, %23 : vector<256x128xf32>
    %cst_23 = arith.constant 0.000000e+00 : f32
    %25 = vector.broadcast %cst_23 : f32 to vector<256x128xf32>
    %26 = arith.maximumf %24, %25 : vector<256x128xf32>
    %27 = arith.truncf %26 : vector<256x128xf32> to vector<256x128xbf16>
    %cst_24 = arith.constant dense<0.000000e+00> : vector<16x128xf32>
    %28 = tpu.matmul %4, %27, %cst_24 {dimension_numbers = #tpu.dot_dimension_numbers<[1], [0], [0], [1], [0, 0, 1, 1], [], []>} : vector<16x256xbf16>, vector<256x128xbf16>, vector<16x128xf32> -> vector<16x128xf32>
    %29 = arith.truncf %28 : vector<16x128xf32> to vector<16x128xbf16>
    %c0_25 = arith.constant 0 : index
    %c0_26 = arith.constant 0 : index
    %c0_27 = arith.constant 0 : index
    %30 = vector.load %arg8[%c0_25, %c0_26, %c0_27] : memref<2x128x128xbf16, #tpu.memory_space<vmem>>, vector<1x128x128xbf16>
    %31 = vector.shape_cast %30 : vector<1x128x128xbf16> to vector<128x128xbf16>
    %cst_28 = arith.constant dense<0.000000e+00> : vector<16x128xf32>
    %32 = tpu.matmul %29, %31, %cst_28 {dimension_numbers = #tpu.dot_dimension_numbers<[1], [0], [0], [1], [0, 0, 1, 1], [], []>} : vector<16x128xbf16>, vector<128x128xbf16>, vector<16x128xf32> -> vector<16x128xf32>
    %33 = arith.addf %5, %32 : vector<16x128xf32>
    %cst_29 = arith.constant dense<0.000000e+00> : vector<256x128xf32>
    %34 = tpu.matmul %2, %27, %cst_29 {dimension_numbers = #tpu.dot_dimension_numbers<[1], [0], [0], [1], [0, 0, 1, 1], [], []>} : vector<256x256xbf16>, vector<256x128xbf16>, vector<256x128xf32> -> vector<256x128xf32>
    %35 = arith.truncf %34 : vector<256x128xf32> to vector<256x128xbf16>
    %c1 = arith.constant 1 : index
    %c0_30 = arith.constant 0 : index
    %c0_31 = arith.constant 0 : index
    %36 = vector.load %arg4[%c1, %c0_30, %c0_31] : memref<2x128x128xbf16, #tpu.memory_space<vmem>>, vector<1x128x128xbf16>
    %37 = vector.shape_cast %36 : vector<1x128x128xbf16> to vector<128x128xbf16>
    %cst_32 = arith.constant dense<0.000000e+00> : vector<256x128xf32>
    %38 = tpu.matmul %35, %37, %cst_32 {dimension_numbers = #tpu.dot_dimension_numbers<[1], [0], [0], [1], [0, 0, 1, 1], [], []>} : vector<256x128xbf16>, vector<128x128xbf16>, vector<256x128xf32> -> vector<256x128xf32>
    %c1_33 = arith.constant 1 : index
    %c0_34 = arith.constant 0 : index
    %c0_35 = arith.constant 0 : index
    %39 = vector.load %arg5[%c1_33, %c0_34, %c0_35] : memref<2x1x128xf32, #tpu.memory_space<vmem>>, vector<1x1x128xf32>
    %40 = vector.shape_cast %39 : vector<1x1x128xf32> to vector<1x128xf32>
    %41 = vector.broadcast %40 : vector<1x128xf32> to vector<256x128xf32>
    %42 = arith.addf %38, %41 : vector<256x128xf32>
    %cst_36 = arith.constant 0.000000e+00 : f32
    %43 = vector.broadcast %cst_36 : f32 to vector<256x128xf32>
    %44 = arith.maximumf %42, %43 : vector<256x128xf32>
    %45 = arith.truncf %44 : vector<256x128xf32> to vector<256x128xbf16>
    %c1_37 = arith.constant 1 : index
    %c0_38 = arith.constant 0 : index
    %c0_39 = arith.constant 0 : index
    %46 = vector.load %arg6[%c1_37, %c0_38, %c0_39] : memref<2x128x128xbf16, #tpu.memory_space<vmem>>, vector<1x128x128xbf16>
    %47 = vector.shape_cast %46 : vector<1x128x128xbf16> to vector<128x128xbf16>
    %cst_40 = arith.constant dense<0.000000e+00> : vector<256x128xf32>
    %48 = tpu.matmul %45, %47, %cst_40 {dimension_numbers = #tpu.dot_dimension_numbers<[1], [0], [0], [1], [0, 0, 1, 1], [], []>} : vector<256x128xbf16>, vector<128x128xbf16>, vector<256x128xf32> -> vector<256x128xf32>
    %c1_41 = arith.constant 1 : index
    %c0_42 = arith.constant 0 : index
    %c0_43 = arith.constant 0 : index
    %49 = vector.load %arg7[%c1_41, %c0_42, %c0_43] : memref<2x1x128xf32, #tpu.memory_space<vmem>>, vector<1x1x128xf32>
    %50 = vector.shape_cast %49 : vector<1x1x128xf32> to vector<1x128xf32>
    %51 = vector.broadcast %50 : vector<1x128xf32> to vector<256x128xf32>
    %52 = arith.addf %48, %51 : vector<256x128xf32>
    %cst_44 = arith.constant 0.000000e+00 : f32
    %53 = vector.broadcast %cst_44 : f32 to vector<256x128xf32>
    %54 = arith.maximumf %52, %53 : vector<256x128xf32>
    %55 = arith.truncf %54 : vector<256x128xf32> to vector<256x128xbf16>
    %cst_45 = arith.constant dense<0.000000e+00> : vector<16x128xf32>
    %56 = tpu.matmul %4, %55, %cst_45 {dimension_numbers = #tpu.dot_dimension_numbers<[1], [0], [0], [1], [0, 0, 1, 1], [], []>} : vector<16x256xbf16>, vector<256x128xbf16>, vector<16x128xf32> -> vector<16x128xf32>
    %57 = arith.truncf %56 : vector<16x128xf32> to vector<16x128xbf16>
    %c1_46 = arith.constant 1 : index
    %c0_47 = arith.constant 0 : index
    %c0_48 = arith.constant 0 : index
    %58 = vector.load %arg8[%c1_46, %c0_47, %c0_48] : memref<2x128x128xbf16, #tpu.memory_space<vmem>>, vector<1x128x128xbf16>
    %59 = vector.shape_cast %58 : vector<1x128x128xbf16> to vector<128x128xbf16>
    %cst_49 = arith.constant dense<0.000000e+00> : vector<16x128xf32>
    %60 = tpu.matmul %57, %59, %cst_49 {dimension_numbers = #tpu.dot_dimension_numbers<[1], [0], [0], [1], [0, 0, 1, 1], [], []>} : vector<16x128xbf16>, vector<128x128xbf16>, vector<16x128xf32> -> vector<16x128xf32>
    %61 = arith.addf %33, %60 : vector<16x128xf32>
    %c0_50 = arith.constant 0 : index
    %c0_51 = arith.constant 0 : index
    %62 = vector.load %arg9[%c0_50, %c0_51] : memref<1x128xf32, #tpu.memory_space<vmem>>, vector<1x128xf32>
    %63 = vector.broadcast %62 : vector<1x128xf32> to vector<16x128xf32>
    %64 = arith.addf %61, %63 : vector<16x128xf32>
    %cst_52 = arith.constant 0.000000e+00 : f32
    %65 = vector.broadcast %cst_52 : f32 to vector<16x128xf32>
    %66 = arith.maximumf %64, %65 : vector<16x128xf32>
    %67 = arith.truncf %66 : vector<16x128xf32> to vector<16x128xbf16>
    %c0_53 = arith.constant 0 : index
    %c0_54 = arith.constant 0 : index
    %68 = vector.load %arg10[%c0_53, %c0_54] : memref<128x128xbf16, #tpu.memory_space<vmem>>, vector<128x128xbf16>
    %cst_55 = arith.constant dense<0.000000e+00> : vector<16x128xf32>
    %69 = tpu.matmul %67, %68, %cst_55 {dimension_numbers = #tpu.dot_dimension_numbers<[1], [0], [0], [1], [0, 0, 1, 1], [], []>} : vector<16x128xbf16>, vector<128x128xbf16>, vector<16x128xf32> -> vector<16x128xf32>
    %c0_56 = arith.constant 0 : index
    %c0_57 = arith.constant 0 : index
    %70 = vector.load %arg11[%c0_56, %c0_57] : memref<1x128xf32, #tpu.memory_space<vmem>>, vector<1x128xf32>
    %71 = vector.broadcast %70 : vector<1x128xf32> to vector<16x128xf32>
    %72 = arith.addf %69, %71 : vector<16x128xf32>
    %c0_58 = arith.constant 0 : index
    %c0_59 = arith.constant 0 : index
    %73 = vector.load %arg12[%c0_58, %c0_59] : memref<16x128xf32, #tpu.memory_space<vmem>>, vector<16x128xf32>
    tpu.vector_store %arg12[%c0_58, %c0_59], %72 {strides = array<i32>} : memref<16x128xf32, #tpu.memory_space<vmem>>, vector<16x128xf32>,
    return
  }
  func.func @transform_0(%arg0: i32) -> (i32, i32) {
    %c0_i32 = arith.constant 0 : i32
    %c0_i32_0 = arith.constant 0 : i32
    return %arg0, %c0_i32 : i32, i32
  }
  func.func @transform_1(%arg0: i32) -> (i32, i32, i32) {
    %c0_i32 = arith.constant 0 : i32
    %c0_i32_0 = arith.constant 0 : i32
    %c0_i32_1 = arith.constant 0 : i32
    return %arg0, %c0_i32, %c0_i32_0 : i32, i32, i32
  }
  func.func @transform_2(%arg0: i32) -> (i32, i32, i32) {
    %c0_i32 = arith.constant 0 : i32
    %c0_i32_0 = arith.constant 0 : i32
    %c0_i32_1 = arith.constant 0 : i32
    return %arg0, %c0_i32, %c0_i32_0 : i32, i32, i32
  }
  func.func @transform_3(%arg0: i32) -> (i32, i32, i32) {
    %c0_i32 = arith.constant 0 : i32
    %c0_i32_0 = arith.constant 0 : i32
    %c0_i32_1 = arith.constant 0 : i32
    %c0_i32_2 = arith.constant 0 : i32
    return %c0_i32, %c0_i32_0, %c0_i32_1 : i32, i32, i32
  }
  func.func @transform_4(%arg0: i32) -> (i32, i32, i32) {
    %c0_i32 = arith.constant 0 : i32
    %c0_i32_0 = arith.constant 0 : i32
    %c0_i32_1 = arith.constant 0 : i32
    %c0_i32_2 = arith.constant 0 : i32
    return %c0_i32, %c0_i32_0, %c0_i32_1 : i32, i32, i32
  }
  func.func @transform_5(%arg0: i32) -> (i32, i32, i32) {
    %c0_i32 = arith.constant 0 : i32
    %c0_i32_0 = arith.constant 0 : i32
    %c0_i32_1 = arith.constant 0 : i32
    %c0_i32_2 = arith.constant 0 : i32
    return %c0_i32, %c0_i32_0, %c0_i32_1 : i32, i32, i32
  }
  func.func @transform_6(%arg0: i32) -> (i32, i32, i32) {
    %c0_i32 = arith.constant 0 : i32
    %c0_i32_0 = arith.constant 0 : i32
    %c0_i32_1 = arith.constant 0 : i32
    %c0_i32_2 = arith.constant 0 : i32
    return %c0_i32, %c0_i32_0, %c0_i32_1 : i32, i32, i32
  }
  func.func @transform_7(%arg0: i32) -> (i32, i32, i32) {
    %c0_i32 = arith.constant 0 : i32
    %c0_i32_0 = arith.constant 0 : i32
    %c0_i32_1 = arith.constant 0 : i32
    %c0_i32_2 = arith.constant 0 : i32
    return %c0_i32, %c0_i32_0, %c0_i32_1 : i32, i32, i32
  }
  func.func @transform_8(%arg0: i32) -> (i32, i32) {
    %c0_i32 = arith.constant 0 : i32
    %c0_i32_0 = arith.constant 0 : i32
    %c0_i32_1 = arith.constant 0 : i32
    return %c0_i32, %c0_i32_0 : i32, i32
  }
  func.func @transform_9(%arg0: i32) -> (i32, i32) {
    %c0_i32 = arith.constant 0 : i32
    %c0_i32_0 = arith.constant 0 : i32
    %c0_i32_1 = arith.constant 0 : i32
    return %c0_i32, %c0_i32_0 : i32, i32
  }
  func.func @transform_10(%arg0: i32) -> (i32, i32) {
    %c0_i32 = arith.constant 0 : i32
    %c0_i32_0 = arith.constant 0 : i32
    %c0_i32_1 = arith.constant 0 : i32
    return %c0_i32, %c0_i32_0 : i32, i32
  }
  func.func @transform_11(%arg0: i32) -> (i32, i32) {
    %c0_i32 = arith.constant 0 : i32
    %c0_i32_0 = arith.constant 0 : i32
    return %arg0, %c0_i32 : i32, i32
  }
}

</mosaic_0001>

<llo_original>
// kernel: tpu_custom_call.1
$region0: #{tpu_custom_call.1}
  #allocation0 [shape = 'u32[]', space=smem, size = 0x4, offset = 0x4, fixed_abs, tag = 'smem constant byte address 0x4 - core index']
  #allocation1 [shape = 'u32[144,128]{1,0:T(1,128)}', space=vmem, size = 0x12000, scoped, tag = 'internal scratch']
  %s0 = inlined_call_operand.hbm [shape: bf16[512,128], index: 0, kind: input, shape index: {}]
  %s1 = inlined_call_operand.hbm [shape: bf16[2,256,256], index: 1, kind: input, shape index: {}]
  %s2 = inlined_call_operand.hbm [shape: bf16[2,16,256], index: 2, kind: input, shape index: {}]
  %s3 = inlined_call_operand.hbm [shape: bf16[2,128,128], index: 3, kind: input, shape index: {}]
  %s4 = inlined_call_operand.vmem [shape: f32[2,1,128], index: 4, kind: input, shape index: {}]
  %s5 = inlined_call_operand.hbm [shape: bf16[2,128,128], index: 5, kind: input, shape index: {}]
  %s6 = inlined_call_operand.vmem [shape: f32[2,1,128], index: 6, kind: input, shape index: {}]
  %s7 = inlined_call_operand.hbm [shape: bf16[2,128,128], index: 7, kind: input, shape index: {}]
  %s8 = inlined_call_operand.vmem [shape: f32[1,128], index: 8, kind: input, shape index: {}]
  %s9 = inlined_call_operand.hbm [shape: bf16[128,128], index: 9, kind: input, shape index: {}]
  %s10 = inlined_call_operand.vmem [shape: f32[1,128], index: 10, kind: input, shape index: {}]
  %s11 = inlined_call_operand.hbm [shape: f32[32,128], index: 11, kind: output, shape index: {}]
  %s12 = sld [smem:[#allocation0]]
  $region105: #{tpu_custom_call.1} parent=0
    _
  %s14 = ssub.s32 1, %s12
  %s15 = scalar_select 0, %s14, %s12
  $region1: #{tpu_custom_call.1} parent=0
    #allocation2 [shape = 'u8[131072]{0}', space=vmem, size = 0x20000, scoped, tag = 'input window, operand 0']
    #allocation3 [shape = 's32[2]{0}', space=sflag, size = 0x8, scoped, tag = 'scoped memory for tpu_custom_call.1']
    #allocation4 [shape = 's32[2]{0}', space=sflag, size = 0x8, scoped, tag = 'scoped memory for tpu_custom_call.1']
    #allocation5 [shape = 'u8[262144]{0}', space=vmem, size = 0x40000, scoped, tag = 'input window, operand 1']
    #allocation6 [shape = 's32[2]{0}', space=sflag, size = 0x8, scoped, tag = 'scoped memory for tpu_custom_call.1']
    #allocation7 [shape = 'u8[16384]{0}', space=vmem, size = 0x4000, scoped, tag = 'input window, operand 2']
    #allocation8 [shape = 'u8[65536]{0}', space=vmem, size = 0x10000, scoped, tag = 'input window, operand 3, single buffered']
    #allocation9 [shape = 's32[1]{0}', space=sflag, size = 0x4, scoped, tag = 'scoped memory for tpu_custom_call.1']
    #allocation10 [shape = 'u8[65536]{0}', space=vmem, size = 0x10000, scoped, tag = 'input window, operand 5, single buffered']
    #allocation11 [shape = 'u8[65536]{0}', space=vmem, size = 0x10000, scoped, tag = 'input window, operand 7, single buffered']
    #allocation12 [shape = 's32[1]{0}', space=sflag, size = 0x4, scoped, tag = 'scoped memory for tpu_custom_call.1']
    #allocation13 [shape = 'u8[32768]{0}', space=vmem, size = 0x8000, scoped, tag = 'input window, operand 9, single buffered']
    #allocation14 [shape = 'u8[16384]{0}', space=vmem, size = 0x4000, scoped, tag = 'output window, operand 0']
    %16 = vsyncpa [#allocation3], 0
    %s17 = scalar_lea.sflag [#allocation3], 1
    %18 = vsyncpa %s17, 0
    %19 = vsyncpa [#allocation6], 0
    %s20 = scalar_lea.sflag [#allocation6], 1
    %21 = vsyncpa %s20, 0
    %22 = vsyncpa [#allocation9], 0
    %23 = vsyncpa [#allocation12], 0
    %24 = vsyncpa [#allocation4], 0
    %s25 = scalar_lea.sflag [#allocation4], 1
    %26 = vsyncpa %s25, 0
    loop: start=0, step=1, limit=4
    $region2: #{tpu_custom_call.1} parent=1 // loop_pre_header
      _
    $region3: #{tpu_custom_call.1} parent=1 // loop_header
      %s28 = sphi 0, %s32
      %p29 = scmp.ge.s32.totalorder %s28, 4
      %s38 = sphi 0, %s40
      %s41 = sphi 0, %s38
      %s42 = sphi 0, %s41
      %s58 = sphi 0, %s42
      %s64 = sphi 0, %s66
      %s67 = sphi 0, %s64
      %s68 = sphi 0, %s67
      %s84 = sphi 0, %s68
      %s90 = sphi 0, %s92
      %s93 = sphi 0, %s90
      %s94 = sphi 0, %s93
      %s110 = sphi 0, %s94
      %s114 = sphi 0, %s114
      %s116 = sphi 0, %s114
      %s117 = sphi 0, %s116
      %s131 = sphi 0, %s117
      %s135 = sphi 0, %s135
      %s137 = sphi 0, %s135
      %s138 = sphi 0, %s137
      %s152 = sphi 0, %s138
      %s156 = sphi 0, %s156
      %s158 = sphi 0, %s156
      %s159 = sphi 0, %s158
      %s173 = sphi 0, %s159
      %s177 = sphi 0, %s177
      %s179 = sphi 0, %s177
      %s180 = sphi 0, %s179
      %s194 = sphi 0, %s180
      %s198 = sphi 0, %s198
      %s200 = sphi 0, %s198
      %s201 = sphi 0, %s200
      %s215 = sphi 0, %s201
      %s219 = sphi 0, %s219
      %s221 = sphi 0, %s219
      %s222 = sphi 0, %s221
      %s236 = sphi 0, %s222
      %s240 = sphi 0, %s240
      %s242 = sphi 0, %s240
      %s243 = sphi 0, %s242
      %s257 = sphi 0, %s243
      %s261 = sphi 0, %s261
      %s263 = sphi 0, %s261
      %s264 = sphi 0, %s263
      %s278 = sphi 0, %s264
      %s284 = sphi 0, %s286
      %s287 = sphi 0, %s284
      %s288 = sphi 0, %s287
      %s304 = sphi 0, %s288
    $region4: #{tpu_custom_call.1} parent=1 // loop_header_branch
      %31 = sbr.rel (%p29) target = $region8
    $region5: #{tpu_custom_call.1} parent=1 // loop_body
      %s33 = ssub.s32 %s28, 1
      %s34 = ssub.s32 %s28, 2
      %s35 = sadd.s32 %s28, 1
      %s36 = ssub.s32 %s28, %s35
      %p37 = scmp.eq.s32.totalorder %s36, 0
      %s39 = sadd.s32 %s38, 1
      %s40 = scalar_select %p37, %s38, %s39
      %p43 = pneg %p37
      %p44 = scmp.eq.s32.totalorder %s28, 1
      %p45 = por %p43, %p44
      %p46 = scmp.ne.s32.totalorder %s38, %s41
      %p47 = scmp.eq.s32.totalorder %s28, 0
      %p48 = por %p46, %p47
      %p49 = scmp.ne.s32.totalorder %s38, %s41
      %p50 = scmp.eq.s32.totalorder %s33, 1
      %p51 = por %p49, %p50
      %p52 = scmp.ne.s32.totalorder %s41, %s42
      %p53 = scmp.eq.s32.totalorder %s33, 0
      %p54 = por %p52, %p53
      %p55 = scmp.ne.s32.totalorder %s41, %s42
      %p56 = scmp.eq.s32.totalorder %s34, 1
      %p57 = por %p55, %p56
      %p59 = scmp.ne.s32.totalorder %s42, %s58
      %p60 = scmp.eq.s32.totalorder %s34, 0
      %p61 = por %p59, %p60
      %s62 = ssub.s32 %s28, %s35
      %p63 = scmp.eq.s32.totalorder %s62, 0
      %s65 = sadd.s32 %s64, 1
      %s66 = scalar_select %p63, %s64, %s65
      %p69 = pneg %p63
      %p70 = scmp.eq.s32.totalorder %s28, 1
      %p71 = por %p69, %p70
      %p72 = scmp.ne.s32.totalorder %s64, %s67
      %p73 = scmp.eq.s32.totalorder %s28, 0
      %p74 = por %p72, %p73
      %p75 = scmp.ne.s32.totalorder %s64, %s67
      %p76 = scmp.eq.s32.totalorder %s33, 1
      %p77 = por %p75, %p76
      %p78 = scmp.ne.s32.totalorder %s67, %s68
      %p79 = scmp.eq.s32.totalorder %s33, 0
      %p80 = por %p78, %p79
      %p81 = scmp.ne.s32.totalorder %s67, %s68
      %p82 = scmp.eq.s32.totalorder %s34, 1
      %p83 = por %p81, %p82
      %p85 = scmp.ne.s32.totalorder %s68, %s84
      %p86 = scmp.eq.s32.totalorder %s34, 0
      %p87 = por %p85, %p86
      %s88 = ssub.s32 %s28, %s35
      %p89 = scmp.eq.s32.totalorder %s88, 0
      %s91 = sadd.s32 %s90, 1
      %s92 = scalar_select %p89, %s90, %s91
      %p95 = pneg %p89
      %p96 = scmp.eq.s32.totalorder %s28, 1
      %p97 = por %p95, %p96
      %p98 = scmp.ne.s32.totalorder %s90, %s93
      %p99 = scmp.eq.s32.totalorder %s28, 0
      %p100 = por %p98, %p99
      %p101 = scmp.ne.s32.totalorder %s90, %s93
      %p102 = scmp.eq.s32.totalorder %s33, 1
      %p103 = por %p101, %p102
      %p104 = scmp.ne.s32.totalorder %s93, %s94
      %p105 = scmp.eq.s32.totalorder %s33, 0
      %p106 = por %p104, %p105
      %p107 = scmp.ne.s32.totalorder %s93, %s94
      %p108 = scmp.eq.s32.totalorder %s34, 1
      %p109 = por %p107, %p108
      %p111 = scmp.ne.s32.totalorder %s94, %s110
      %p112 = scmp.eq.s32.totalorder %s34, 0
      %p113 = por %p111, %p112
      %s115 = sadd.s32 %s114, 1
      %p118 = scmp.eq.s32.totalorder %s28, 1
      %p119 = scmp.ne.s32.totalorder %s114, %s116
      %p120 = scmp.eq.s32.totalorder %s28, 0
      %p121 = por %p119, %p120
      %p122 = scmp.ne.s32.totalorder %s114, %s116
      %p123 = scmp.eq.s32.totalorder %s33, 1
      %p124 = por %p122, %p123
      %p125 = scmp.ne.s32.totalorder %s116, %s117
      %p126 = scmp.eq.s32.totalorder %s33, 0
      %p127 = por %p125, %p126
      %p128 = scmp.ne.s32.totalorder %s116, %s117
      %p129 = scmp.eq.s32.totalorder %s34, 1
      %p130 = por %p128, %p129
      %p132 = scmp.ne.s32.totalorder %s117, %s131
      %p133 = scmp.eq.s32.totalorder %s34, 0
      %p134 = por %p132, %p133
      %s136 = sadd.s32 %s135, 1
      %p139 = scmp.eq.s32.totalorder %s28, 1
      %p140 = scmp.ne.s32.totalorder %s135, %s137
      %p141 = scmp.eq.s32.totalorder %s28, 0
      %p142 = por %p140, %p141
      %p143 = scmp.ne.s32.totalorder %s135, %s137
      %p144 = scmp.eq.s32.totalorder %s33, 1
      %p145 = por %p143, %p144
      %p146 = scmp.ne.s32.totalorder %s137, %s138
      %p147 = scmp.eq.s32.totalorder %s33, 0
      %p148 = por %p146, %p147
      %p149 = scmp.ne.s32.totalorder %s137, %s138
      %p150 = scmp.eq.s32.totalorder %s34, 1
      %p151 = por %p149, %p150
      %p153 = scmp.ne.s32.totalorder %s138, %s152
      %p154 = scmp.eq.s32.totalorder %s34, 0
      %p155 = por %p153, %p154
      %s157 = sadd.s32 %s156, 1
      %p160 = scmp.eq.s32.totalorder %s28, 1
      %p161 = scmp.ne.s32.totalorder %s156, %s158
      %p162 = scmp.eq.s32.totalorder %s28, 0
      %p163 = por %p161, %p162
      %p164 = scmp.ne.s32.totalorder %s156, %s158
      %p165 = scmp.eq.s32.totalorder %s33, 1
      %p166 = por %p164, %p165
      %p167 = scmp.ne.s32.totalorder %s158, %s159
      %p168 = scmp.eq.s32.totalorder %s33, 0
      %p169 = por %p167, %p168
      %p170 = scmp.ne.s32.totalorder %s158, %s159
      %p171 = scmp.eq.s32.totalorder %s34, 1
      %p172 = por %p170, %p171
      %p174 = scmp.ne.s32.totalorder %s159, %s173
      %p175 = scmp.eq.s32.totalorder %s34, 0
      %p176 = por %p174, %p175
      %s178 = sadd.s32 %s177, 1
      %p181 = scmp.eq.s32.totalorder %s28, 1
      %p182 = scmp.ne.s32.totalorder %s177, %s179
      %p183 = scmp.eq.s32.totalorder %s28, 0
      %p184 = por %p182, %p183
      %p185 = scmp.ne.s32.totalorder %s177, %s179
      %p186 = scmp.eq.s32.totalorder %s33, 1
      %p187 = por %p185, %p186
      %p188 = scmp.ne.s32.totalorder %s179, %s180
      %p189 = scmp.eq.s32.totalorder %s33, 0
      %p190 = por %p188, %p189
      %p191 = scmp.ne.s32.totalorder %s179, %s180
      %p192 = scmp.eq.s32.totalorder %s34, 1
      %p193 = por %p191, %p192
      %p195 = scmp.ne.s32.totalorder %s180, %s194
      %p196 = scmp.eq.s32.totalorder %s34, 0
      %p197 = por %p195, %p196
      %s199 = sadd.s32 %s198, 1
      %p202 = scmp.eq.s32.totalorder %s28, 1
      %p203 = scmp.ne.s32.totalorder %s198, %s200
      %p204 = scmp.eq.s32.totalorder %s28, 0
      %p205 = por %p203, %p204
      %p206 = scmp.ne.s32.totalorder %s198, %s200
      %p207 = scmp.eq.s32.totalorder %s33, 1
      %p208 = por %p206, %p207
      %p209 = scmp.ne.s32.totalorder %s200, %s201
      %p210 = scmp.eq.s32.totalorder %s33, 0
      %p211 = por %p209, %p210
      %p212 = scmp.ne.s32.totalorder %s200, %s201
      %p213 = scmp.eq.s32.totalorder %s34, 1
      %p214 = por %p212, %p213
      %p216 = scmp.ne.s32.totalorder %s201, %s215
      %p217 = scmp.eq.s32.totalorder %s34, 0
      %p218 = por %p216, %p217
      %s220 = sadd.s32 %s219, 1
      %p223 = scmp.eq.s32.totalorder %s28, 1
      %p224 = scmp.ne.s32.totalorder %s219, %s221
      %p225 = scmp.eq.s32.totalorder %s28, 0
      %p226 = por %p224, %p225
      %p227 = scmp.ne.s32.totalorder %s219, %s221
      %p228 = scmp.eq.s32.totalorder %s33, 1
      %p229 = por %p227, %p228
      %p230 = scmp.ne.s32.totalorder %s221, %s222
      %p231 = scmp.eq.s32.totalorder %s33, 0
      %p232 = por %p230, %p231
      %p233 = scmp.ne.s32.totalorder %s221, %s222
      %p234 = scmp.eq.s32.totalorder %s34, 1
      %p235 = por %p233, %p234
      %p237 = scmp.ne.s32.totalorder %s222, %s236
      %p238 = scmp.eq.s32.totalorder %s34, 0
      %p239 = por %p237, %p238
      %s241 = sadd.s32 %s240, 1
      %p244 = scmp.eq.s32.totalorder %s28, 1
      %p245 = scmp.ne.s32.totalorder %s240, %s242
      %p246 = scmp.eq.s32.totalorder %s28, 0
      %p247 = por %p245, %p246
      %p248 = scmp.ne.s32.totalorder %s240, %s242
      %p249 = scmp.eq.s32.totalorder %s33, 1
      %p250 = por %p248, %p249
      %p251 = scmp.ne.s32.totalorder %s242, %s243
      %p252 = scmp.eq.s32.totalorder %s33, 0
      %p253 = por %p251, %p252
      %p254 = scmp.ne.s32.totalorder %s242, %s243
      %p255 = scmp.eq.s32.totalorder %s34, 1
      %p256 = por %p254, %p255
      %p258 = scmp.ne.s32.totalorder %s243, %s257
      %p259 = scmp.eq.s32.totalorder %s34, 0
      %p260 = por %p258, %p259
      %s262 = sadd.s32 %s261, 1
      %p265 = scmp.eq.s32.totalorder %s28, 1
      %p266 = scmp.ne.s32.totalorder %s261, %s263
      %p267 = scmp.eq.s32.totalorder %s28, 0
      %p268 = por %p266, %p267
      %p269 = scmp.ne.s32.totalorder %s261, %s263
      %p270 = scmp.eq.s32.totalorder %s33, 1
      %p271 = por %p269, %p270
      %p272 = scmp.ne.s32.totalorder %s263, %s264
      %p273 = scmp.eq.s32.totalorder %s33, 0
      %p274 = por %p272, %p273
      %p275 = scmp.ne.s32.totalorder %s263, %s264
      %p276 = scmp.eq.s32.totalorder %s34, 1
      %p277 = por %p275, %p276
      %p279 = scmp.ne.s32.totalorder %s264, %s278
      %p280 = scmp.eq.s32.totalorder %s34, 0
      %p281 = por %p279, %p280
      %s282 = ssub.s32 %s28, %s35
      %p283 = scmp.eq.s32.totalorder %s282, 0
      %s285 = sadd.s32 %s284, 1
      %s286 = scalar_select %p283, %s284, %s285
      %p289 = pneg %p283
      %p290 = scmp.eq.s32.totalorder %s28, 1
      %p291 = por %p289, %p290
      %p292 = scmp.ne.s32.totalorder %s284, %s287
      %p293 = scmp.eq.s32.totalorder %s28, 0
      %p294 = por %p292, %p293
      %p295 = scmp.ne.s32.totalorder %s284, %s287
      %p296 = scmp.eq.s32.totalorder %s33, 1
      %p297 = por %p295, %p296
      %p298 = scmp.ne.s32.totalorder %s287, %s288
      %p299 = scmp.eq.s32.totalorder %s33, 0
      %p300 = por %p298, %p299
      %p301 = scmp.ne.s32.totalorder %s287, %s288
      %p302 = scmp.eq.s32.totalorder %s34, 1
      %p303 = por %p301, %p302
      %p305 = scmp.ne.s32.totalorder %s288, %s304
      %p306 = scmp.eq.s32.totalorder %s34, 0
      %p307 = por %p305, %p306
      %p308 = scmp.le.s32.totalorder 1, %s28
      %p309 = scmp.lt.s32.totalorder %s28, 3
      %p310 = pnand %p308, %p309
      %p311 = pneg %p310
      // Predicated region
      $region9: #{tpu_custom_call.1} parent=5 // pred_check
        _
      $region10: #{tpu_custom_call.1} parent=5 // pred_check_branch
        %313 = sbr.rel (%p310) target = $region12
      $region11: #{tpu_custom_call.1} parent=5 // pred_region
        %s314 = ssub.s32 %s28, 1
        // Predicated region
        $region13: #{tpu_custom_call.1} parent=11 // pred_check
          %p315 = pneg %p127
        $region14: #{tpu_custom_call.1} parent=11 // pred_check_branch
          %317 = sbr.rel (%p315) target = $region16
        $region15: #{tpu_custom_call.1} parent=11 // pred_region
          %s319 = ssub.s32 2048, 2048
          %320 = vsyncadd [#allocation9], %s319
          %s321 = sshll.u32 [#allocation8], 4
          %s322 = int_to_ptr.vmem [resolvable:$true] %s321
          %327 = dma.hbm_to_vmem [thread:$0]  %s3, 2048, %s322, [#allocation9], 64, 64, 4
        $region16: #{tpu_custom_call.1} parent=11 // pred_fallthru
          _
        // Predicated region
        $region17: #{tpu_custom_call.1} parent=11 // pred_check
          %p328 = pneg %p148
        $region18: #{tpu_custom_call.1} parent=11 // pred_check_branch
          %330 = sbr.rel (%p328) target = $region20
        $region19: #{tpu_custom_call.1} parent=11 // pred_region
          _
        $region20: #{tpu_custom_call.1} parent=11 // pred_fallthru
          _
        // Predicated region
        $region21: #{tpu_custom_call.1} parent=11 // pred_check
          %p331 = pneg %p169
        $region22: #{tpu_custom_call.1} parent=11 // pred_check_branch
          %333 = sbr.rel (%p331) target = $region24
        $region23: #{tpu_custom_call.1} parent=11 // pred_region
          %s335 = ssub.s32 2048, 2048
          %336 = vsyncadd [#allocation9], %s335
          %s337 = sshll.u32 [#allocation10], 4
          %s338 = int_to_ptr.vmem [resolvable:$true] %s337
          %343 = dma.hbm_to_vmem [thread:$0]  %s5, 2048, %s338, [#allocation9], 64, 64, 4
        $region24: #{tpu_custom_call.1} parent=11 // pred_fallthru
          _
        // Predicated region
        $region25: #{tpu_custom_call.1} parent=11 // pred_check
          %p344 = pneg %p190
        $region26: #{tpu_custom_call.1} parent=11 // pred_check_branch
          %346 = sbr.rel (%p344) target = $region28
        $region27: #{tpu_custom_call.1} parent=11 // pred_region
          _
        $region28: #{tpu_custom_call.1} parent=11 // pred_fallthru
          _
        // Predicated region
        $region29: #{tpu_custom_call.1} parent=11 // pred_check
          %p347 = pneg %p211
        $region30: #{tpu_custom_call.1} parent=11 // pred_check_branch
          %349 = sbr.rel (%p347) target = $region32
        $region31: #{tpu_custom_call.1} parent=11 // pred_region
          %s351 = ssub.s32 2048, 2048
          %352 = vsyncadd [#allocation12], %s351
          %s353 = sshll.u32 [#allocation11], 4
          %s354 = int_to_ptr.vmem [resolvable:$true] %s353
          %359 = dma.hbm_to_vmem [thread:$0]  %s7, 2048, %s354, [#allocation12], 64, 64, 4
        $region32: #{tpu_custom_call.1} parent=11 // pred_fallthru
          _
        // Predicated region
        $region33: #{tpu_custom_call.1} parent=11 // pred_check
          %p360 = pneg %p232
        $region34: #{tpu_custom_call.1} parent=11 // pred_check_branch
          %362 = sbr.rel (%p360) target = $region36
        $region35: #{tpu_custom_call.1} parent=11 // pred_region
          _
        $region36: #{tpu_custom_call.1} parent=11 // pred_fallthru
          _
        // Predicated region
        $region37: #{tpu_custom_call.1} parent=11 // pred_check
          %p363 = pneg %p253
        $region38: #{tpu_custom_call.1} parent=11 // pred_check_branch
          %365 = sbr.rel (%p363) target = $region40
        $region39: #{tpu_custom_call.1} parent=11 // pred_region
          %s367 = ssub.s32 1024, 1024
          %368 = vsyncadd [#allocation12], %s367
          %s369 = sshll.u32 [#allocation13], 4
          %s370 = int_to_ptr.vmem [resolvable:$true] %s369
          %375 = dma.hbm_to_vmem [thread:$0]  %s9, 1024, %s370, [#allocation12], 64, 64, 4
        $region40: #{tpu_custom_call.1} parent=11 // pred_fallthru
          _
        // Predicated region
        $region41: #{tpu_custom_call.1} parent=11 // pred_check
          %p376 = pneg %p274
        $region42: #{tpu_custom_call.1} parent=11 // pred_check_branch
          %378 = sbr.rel (%p376) target = $region44
        $region43: #{tpu_custom_call.1} parent=11 // pred_region
          _
        $region44: #{tpu_custom_call.1} parent=11 // pred_fallthru
          _
      $region12: #{tpu_custom_call.1} parent=5 // pred_fallthru
        _
      %p379 = scmp.lt.s32.totalorder %s28, 2
      // Predicated region
      $region45: #{tpu_custom_call.1} parent=5 // pred_check
        %p380 = pneg %p379
      $region46: #{tpu_custom_call.1} parent=5 // pred_check_branch
        %382 = sbr.rel (%p380) target = $region48
      $region47: #{tpu_custom_call.1} parent=5 // pred_region
        // Predicated region
        $region49: #{tpu_custom_call.1} parent=47 // pred_check
          %p383 = pneg %p48
        $region50: #{tpu_custom_call.1} parent=47 // pred_check_branch
          %385 = sbr.rel (%p383) target = $region52
        $region51: #{tpu_custom_call.1} parent=47 // pred_region
          %s386 = sand.u32 %s38, 1
          %s387 = scalar_lea.sflag [#allocation3], %s386
          %s388 = sand.u32 %s38, 1
          %s389 = smul.addr %s388, 128
          %s390 = scalar_lea.vmem [#allocation2], %s389
          %s391 = smul.u32 32, %s28
          %s393 = ssub.s32 2048, 2048
          %394 = vsyncadd %s387, %s393
          %s395 = smul.addr %s391, 64
          %s396 = scalar_lea.hbm %s0, %s395
          %s397 = sshll.u32 %s390, 4
          %s398 = int_to_ptr.vmem [resolvable:$true] %s397
          %403 = dma.hbm_to_vmem [thread:$0]  %s396, 2048, %s398, %s387, 64, 64, 4
        $region52: #{tpu_custom_call.1} parent=47 // pred_fallthru
          _
        // Predicated region
        $region53: #{tpu_custom_call.1} parent=47 // pred_check
          %p404 = pneg %p74
        $region54: #{tpu_custom_call.1} parent=47 // pred_check_branch
          %406 = sbr.rel (%p404) target = $region56
        $region55: #{tpu_custom_call.1} parent=47 // pred_region
          %s407 = sand.u32 %s28, 1
          %s408 = scalar_lea.sflag [#allocation6], %s407
          %s409 = sand.u32 %s64, 1
          %s410 = smul.addr %s409, 256
          %s411 = scalar_lea.vmem [#allocation5], %s410
          %s413 = ssub.s32 4096, 4096
          %414 = vsyncadd %s408, %s413
          %s415 = smul.addr %s28, 64
          %s416 = smul.addr %s415, 64
          %s417 = scalar_lea.hbm %s1, %s416
          %s418 = sshll.u32 %s411, 4
          %s419 = int_to_ptr.vmem [resolvable:$true] %s418
          %424 = dma.hbm_to_vmem [thread:$0]  %s417, 4096, %s419, %s408, 128, 128, 8
        $region56: #{tpu_custom_call.1} parent=47 // pred_fallthru
          _
        // Predicated region
        $region57: #{tpu_custom_call.1} parent=47 // pred_check
          %p425 = pneg %p100
        $region58: #{tpu_custom_call.1} parent=47 // pred_check_branch
          %427 = sbr.rel (%p425) target = $region60
        $region59: #{tpu_custom_call.1} parent=47 // pred_region
          %s428 = sand.u32 %s28, 1
          %s429 = scalar_lea.sflag [#allocation6], %s428
          %s430 = sand.u32 %s90, 1
          %s431 = smul.addr %s430, 16
          %s432 = scalar_lea.vmem [#allocation7], %s431
          %s434 = ssub.s32 256, 256
          %435 = vsyncadd %s429, %s434
          %s436 = smul.addr %s28, 4
          %s437 = smul.addr %s436, 64
          %s438 = scalar_lea.hbm %s2, %s437
          %s439 = sshll.u32 %s432, 4
          %s440 = int_to_ptr.vmem [resolvable:$true] %s439
          %445 = dma.hbm_to_vmem [thread:$0]  %s438, 256, %s440, %s429, 128, 128, 8
        $region60: #{tpu_custom_call.1} parent=47 // pred_fallthru
          _
      $region48: #{tpu_custom_call.1} parent=5 // pred_fallthru
        _
      %p446 = scmp.le.s32.totalorder 1, %s28
      %p447 = scmp.lt.s32.totalorder %s28, 3
      %p448 = pnand %p446, %p447
      %p449 = pneg %p448
      // Predicated region
      $region61: #{tpu_custom_call.1} parent=5 // pred_check
        _
      $region62: #{tpu_custom_call.1} parent=5 // pred_check_branch
        %451 = sbr.rel (%p448) target = $region64
      $region63: #{tpu_custom_call.1} parent=5 // pred_region
        %s452 = ssub.s32 %s28, 1
        %s453 = sand.u32 %s41, 1
        %s454 = scalar_lea.sflag [#allocation3], %s453
        %s455 = sand.u32 %s41, 1
        %s456 = smul.addr %s455, 128
        %s457 = scalar_lea.vmem [#allocation2], %s456
        // Predicated region
        $region65: #{tpu_custom_call.1} parent=63 // pred_check
          %p458 = pneg %p54
        $region66: #{tpu_custom_call.1} parent=63 // pred_check_branch
          %460 = sbr.rel (%p458) target = $region68
        $region67: #{tpu_custom_call.1} parent=63 // pred_region
          %461 = dma.done %s454, 2048
        $region68: #{tpu_custom_call.1} parent=63 // pred_fallthru
          _
        %s462 = sand.u32 %s33, 1
        %s463 = scalar_lea.sflag [#allocation6], %s462
        %s464 = sand.u32 %s67, 1
        %s465 = smul.addr %s464, 256
        %s466 = scalar_lea.vmem [#allocation5], %s465
        // Predicated region
        $region69: #{tpu_custom_call.1} parent=63 // pred_check
          %p467 = pneg %p80
        $region70: #{tpu_custom_call.1} parent=63 // pred_check_branch
          %469 = sbr.rel (%p467) target = $region72
        $region71: #{tpu_custom_call.1} parent=63 // pred_region
          %470 = dma.done %s463, 4096
        $region72: #{tpu_custom_call.1} parent=63 // pred_fallthru
          _
        %s471 = sand.u32 %s33, 1
        %s472 = scalar_lea.sflag [#allocation6], %s471
        %s473 = sand.u32 %s93, 1
        %s474 = smul.addr %s473, 16
        %s475 = scalar_lea.vmem [#allocation7], %s474
        // Predicated region
        $region73: #{tpu_custom_call.1} parent=63 // pred_check
          %p476 = pneg %p106
        $region74: #{tpu_custom_call.1} parent=63 // pred_check_branch
          %478 = sbr.rel (%p476) target = $region76
        $region75: #{tpu_custom_call.1} parent=63 // pred_region
          %479 = dma.done %s472, 256
        $region76: #{tpu_custom_call.1} parent=63 // pred_fallthru
          _
        // Predicated region
        $region77: #{tpu_custom_call.1} parent=63 // pred_check
          %p480 = pneg %p127
        $region78: #{tpu_custom_call.1} parent=63 // pred_check_branch
          %482 = sbr.rel (%p480) target = $region80
        $region79: #{tpu_custom_call.1} parent=63 // pred_region
          %483 = dma.done [#allocation9], 2048
        $region80: #{tpu_custom_call.1} parent=63 // pred_fallthru
          _
        // Predicated region
        $region81: #{tpu_custom_call.1} parent=63 // pred_check
          %p484 = pneg %p169
        $region82: #{tpu_custom_call.1} parent=63 // pred_check_branch
          %486 = sbr.rel (%p484) target = $region84
        $region83: #{tpu_custom_call.1} parent=63 // pred_region
          %487 = dma.done [#allocation9], 2048
        $region84: #{tpu_custom_call.1} parent=63 // pred_fallthru
          _
        // Predicated region
        $region85: #{tpu_custom_call.1} parent=63 // pred_check
          %p488 = pneg %p211
        $region86: #{tpu_custom_call.1} parent=63 // pred_check_branch
          %490 = sbr.rel (%p488) target = $region88
        $region87: #{tpu_custom_call.1} parent=63 // pred_region
          %491 = dma.done [#allocation12], 2048
        $region88: #{tpu_custom_call.1} parent=63 // pred_fallthru
          _
        // Predicated region
        $region89: #{tpu_custom_call.1} parent=63 // pred_check
          %p492 = pneg %p253
        $region90: #{tpu_custom_call.1} parent=63 // pred_check_branch
          %494 = sbr.rel (%p492) target = $region92
        $region91: #{tpu_custom_call.1} parent=63 // pred_region
          %495 = dma.done [#allocation12], 1024
        $region92: #{tpu_custom_call.1} parent=63 // pred_fallthru
          _
        %s496 = sand.u32 %s41, 1
        %s497 = scalar_lea.sflag [#allocation3], %s496
        %s498 = sand.u32 %s41, 1
        %s499 = smul.addr %s498, 128
        %s500 = scalar_lea.vmem [#allocation2], %s499
        %p501 = pneg %p54
        %p502 = pneg %p51
        %s503 = sand.u32 %s33, 1
        %s504 = scalar_lea.sflag [#allocation6], %s503
        %s505 = sand.u32 %s67, 1
        %s506 = smul.addr %s505, 256
        %s507 = scalar_lea.vmem [#allocation5], %s506
        %p508 = pneg %p80
        %p509 = pneg %p77
        %s510 = sand.u32 %s33, 1
        %s511 = scalar_lea.sflag [#allocation6], %s510
        %s512 = sand.u32 %s93, 1
        %s513 = smul.addr %s512, 16
        %s514 = scalar_lea.vmem [#allocation7], %s513
        %p515 = pneg %p106
        %p516 = pneg %p103
        %p517 = pneg %p127
        %p518 = pneg %p124
        %p519 = pneg %p148
        %p520 = pneg %p145
        %p521 = pneg %p169
        %p522 = pneg %p166
        %p523 = pneg %p190
        %p524 = pneg %p187
        %p525 = pneg %p211
        %p526 = pneg %p208
        %p527 = pneg %p232
        %p528 = pneg %p229
        %p529 = pneg %p253
        %p530 = pneg %p250
        %p531 = pneg %p274
        %p532 = pneg %p271
        %p533 = pneg %p300
        %p534 = pneg %p297
        %s535 = sand.u32 %s287, 1
        %s536 = scalar_lea.sflag [#allocation4], %s535
        %s537 = sand.u32 %s287, 1
        %s538 = smul.addr %s537, 16
        %s539 = scalar_lea.vmem [#allocation14], %s538
        %s540 = smul.u32 32, %s33
        %s541 = smul.u32 2, %s33
        %v543 = vld [vmem:[%s457] sm:$0xf]
        %v544 = vld [vmem:[%s457 + $0x4] sm:$0xf]
        %v545 = vld [vmem:[%s457 + $0x8] sm:$0xf]
        %v546 = vld [vmem:[%s457 + $0xc] sm:$0xf]
        %v547 = vld [vmem:[%s457 + $0x10] sm:$0xf]
        %v548 = vld [vmem:[%s457 + $0x14] sm:$0xf]
        %v549 = vld [vmem:[%s457 + $0x18] sm:$0xf]
        %v550 = vld [vmem:[%s457 + $0x1c] sm:$0xf]
        %v551 = vld [vmem:[%s457 + $0x20] sm:$0xf]
        %v552 = vld [vmem:[%s457 + $0x24] sm:$0xf]
        %v553 = vld [vmem:[%s457 + $0x28] sm:$0xf]
        %v554 = vld [vmem:[%s457 + $0x2c] sm:$0xf]
        %v555 = vld [vmem:[%s457 + $0x30] sm:$0xf]
        %v556 = vld [vmem:[%s457 + $0x34] sm:$0xf]
        %v557 = vld [vmem:[%s457 + $0x38] sm:$0xf]
        %v558 = vld [vmem:[%s457 + $0x3c] sm:$0xf]
        %v559 = vld [vmem:[%s457 + $0x40] sm:$0xf]
        %v560 = vld [vmem:[%s457 + $0x44] sm:$0xf]
        %v561 = vld [vmem:[%s457 + $0x48] sm:$0xf]
        %v562 = vld [vmem:[%s457 + $0x4c] sm:$0xf]
        %v563 = vld [vmem:[%s457 + $0x50] sm:$0xf]
        %v564 = vld [vmem:[%s457 + $0x54] sm:$0xf]
        %v565 = vld [vmem:[%s457 + $0x58] sm:$0xf]
        %v566 = vld [vmem:[%s457 + $0x5c] sm:$0xf]
        %v567 = vld [vmem:[%s457 + $0x60] sm:$0xf]
        %v568 = vld [vmem:[%s457 + $0x64] sm:$0xf]
        %v569 = vld [vmem:[%s457 + $0x68] sm:$0xf]
        %v570 = vld [vmem:[%s457 + $0x6c] sm:$0xf]
        %v571 = vld [vmem:[%s457 + $0x70] sm:$0xf]
        %v572 = vld [vmem:[%s457 + $0x74] sm:$0xf]
        %v573 = vld [vmem:[%s457 + $0x78] sm:$0xf]
        %v574 = vld [vmem:[%s457 + $0x7c] sm:$0xf]
        %v575 = vld [vmem:[%s466] sm:$0xff]
        %v576 = vld [vmem:[%s466 + $0x8] sm:$0xff]
        %v577 = vld [vmem:[%s466 + $0x10] sm:$0xff]
        %v578 = vld [vmem:[%s466 + $0x18] sm:$0xff]
        %v579 = vld [vmem:[%s466 + $0x20] sm:$0xff]
        %v580 = vld [vmem:[%s466 + $0x28] sm:$0xff]
        %v581 = vld [vmem:[%s466 + $0x30] sm:$0xff]
        %v582 = vld [vmem:[%s466 + $0x38] sm:$0xff]
        %v583 = vld [vmem:[%s466 + $0x40] sm:$0xff]
        %v584 = vld [vmem:[%s466 + $0x48] sm:$0xff]
        %v585 = vld [vmem:[%s466 + $0x50] sm:$0xff]
        %v586 = vld [vmem:[%s466 + $0x58] sm:$0xff]
        %v587 = vld [vmem:[%s466 + $0x60] sm:$0xff]
        %v588 = vld [vmem:[%s466 + $0x68] sm:$0xff]
        %v589 = vld [vmem:[%s466 + $0x70] sm:$0xff]
        %v590 = vld [vmem:[%s466 + $0x78] sm:$0xff]
        %v591 = vld [vmem:[%s466 + $0x80] sm:$0xff]
        %v592 = vld [vmem:[%s466 + $0x88] sm:$0xff]
        %v593 = vld [vmem:[%s466 + $0x90] sm:$0xff]
        %v594 = vld [vmem:[%s466 + $0x98] sm:$0xff]
        %v595 = vld [vmem:[%s466 + $0xa0] sm:$0xff]
        %v596 = vld [vmem:[%s466 + $0xa8] sm:$0xff]
        %v597 = vld [vmem:[%s466 + $0xb0] sm:$0xff]
        %v598 = vld [vmem:[%s466 + $0xb8] sm:$0xff]
        %v599 = vld [vmem:[%s466 + $0xc0] sm:$0xff]
        %v600 = vld [vmem:[%s466 + $0xc8] sm:$0xff]
        %v601 = vld [vmem:[%s466 + $0xd0] sm:$0xff]
        %v602 = vld [vmem:[%s466 + $0xd8] sm:$0xff]
        %v603 = vld [vmem:[%s466 + $0xe0] sm:$0xff]
        %v604 = vld [vmem:[%s466 + $0xe8] sm:$0xff]
        %v605 = vld [vmem:[%s466 + $0xf0] sm:$0xff]
        %v606 = vld [vmem:[%s466 + $0xf8] sm:$0xff]
        %v607 = vld [vmem:[%s475] sm:$0xff]
        %v608 = vld [vmem:[%s475 + $0x8] sm:$0xff]
        %v641 = vunpack.c.l.b16 %v575
        %v642 = vunpack.c.h.b16 %v575
        %v643 = vunpack.c.l.b16 %v576
        %v644 = vunpack.c.h.b16 %v576
        %v645 = vunpack.c.l.b16 %v577
        %v646 = vunpack.c.h.b16 %v577
        %v647 = vunpack.c.l.b16 %v578
        %v648 = vunpack.c.h.b16 %v578
        %v649 = vunpack.c.l.b16 %v579
        %v650 = vunpack.c.h.b16 %v579
        %v651 = vunpack.c.l.b16 %v580
        %v652 = vunpack.c.h.b16 %v580
        %v653 = vunpack.c.l.b16 %v581
        %v654 = vunpack.c.h.b16 %v581
        %v655 = vunpack.c.l.b16 %v582
        %v656 = vunpack.c.h.b16 %v582
        %v657 = vunpack.c.l.b16 %v583
        %v658 = vunpack.c.h.b16 %v583
        %v659 = vunpack.c.l.b16 %v584
        %v660 = vunpack.c.h.b16 %v584
        %v661 = vunpack.c.l.b16 %v585
        %v662 = vunpack.c.h.b16 %v585
        %v663 = vunpack.c.l.b16 %v586
        %v664 = vunpack.c.h.b16 %v586
        %v665 = vunpack.c.l.b16 %v587
        %v666 = vunpack.c.h.b16 %v587
        %v667 = vunpack.c.l.b16 %v588
        %v668 = vunpack.c.h.b16 %v588
        %v669 = vunpack.c.l.b16 %v589
        %v670 = vunpack.c.h.b16 %v589
        %v671 = vunpack.c.l.b16 %v590
        %v672 = vunpack.c.h.b16 %v590
        %v673 = vunpack.c.l.b16 %v591
        %v674 = vunpack.c.h.b16 %v591
        %v675 = vunpack.c.l.b16 %v592
        %v676 = vunpack.c.h.b16 %v592
        %v677 = vunpack.c.l.b16 %v593
        %v678 = vunpack.c.h.b16 %v593
        %v679 = vunpack.c.l.b16 %v594
        %v680 = vunpack.c.h.b16 %v594
        %v681 = vunpack.c.l.b16 %v595
        %v682 = vunpack.c.h.b16 %v595
        %v683 = vunpack.c.l.b16 %v596
        %v684 = vunpack.c.h.b16 %v596
        %v685 = vunpack.c.l.b16 %v597
        %v686 = vunpack.c.h.b16 %v597
        %v687 = vunpack.c.l.b16 %v598
        %v688 = vunpack.c.h.b16 %v598
        %v689 = vunpack.c.l.b16 %v599
        %v690 = vunpack.c.h.b16 %v599
        %v691 = vunpack.c.l.b16 %v600
        %v692 = vunpack.c.h.b16 %v600
        %v693 = vunpack.c.l.b16 %v601
        %v694 = vunpack.c.h.b16 %v601
        %v695 = vunpack.c.l.b16 %v602
        %v696 = vunpack.c.h.b16 %v602
        %v697 = vunpack.c.l.b16 %v603
        %v698 = vunpack.c.h.b16 %v603
        %v699 = vunpack.c.l.b16 %v604
        %v700 = vunpack.c.h.b16 %v604
        %v701 = vunpack.c.l.b16 %v605
        %v702 = vunpack.c.h.b16 %v605
        %v703 = vunpack.c.l.b16 %v606
        %v704 = vunpack.c.h.b16 %v606
        %v705 = vpack.c.b16 %v643, %v641
        %v706 = vpack.c.b16 %v644, %v642
        %v707 = vpack.c.b16 %v647, %v645
        %v708 = vpack.c.b16 %v648, %v646
        %v709 = vpack.c.b16 %v651, %v649
        %v710 = vpack.c.b16 %v652, %v650
        %v711 = vpack.c.b16 %v655, %v653
        %v712 = vpack.c.b16 %v656, %v654
        %v713 = vpack.c.b16 %v659, %v657
        %v714 = vpack.c.b16 %v660, %v658
        %v715 = vpack.c.b16 %v663, %v661
        %v716 = vpack.c.b16 %v664, %v662
        %v717 = vpack.c.b16 %v667, %v665
        %v718 = vpack.c.b16 %v668, %v666
        %v719 = vpack.c.b16 %v671, %v669
        %v720 = vpack.c.b16 %v672, %v670
        %v721 = vpack.c.b16 %v675, %v673
        %v722 = vpack.c.b16 %v676, %v674
        %v723 = vpack.c.b16 %v679, %v677
        %v724 = vpack.c.b16 %v680, %v678
        %v725 = vpack.c.b16 %v683, %v681
        %v726 = vpack.c.b16 %v684, %v682
        %v727 = vpack.c.b16 %v687, %v685
        %v728 = vpack.c.b16 %v688, %v686
        %v729 = vpack.c.b16 %v691, %v689
        %v730 = vpack.c.b16 %v692, %v690
        %v731 = vpack.c.b16 %v695, %v693
        %v732 = vpack.c.b16 %v696, %v694
        %v733 = vpack.c.b16 %v699, %v697
        %v734 = vpack.c.b16 %v700, %v698
        %v735 = vpack.c.b16 %v703, %v701
        %v736 = vpack.c.b16 %v704, %v702
        %v801 = vunpack.c.l.b16 %v543
        %v802 = vunpack.c.l.b16 %v544
        %v803 = vunpack.c.l.b16 %v545
        %v804 = vunpack.c.l.b16 %v546
        %v805 = vunpack.c.l.b16 %v547
        %v806 = vunpack.c.l.b16 %v548
        %v807 = vunpack.c.l.b16 %v549
        %v808 = vunpack.c.l.b16 %v550
        %v809 = vunpack.c.l.b16 %v551
        %v810 = vunpack.c.l.b16 %v552
        %v811 = vunpack.c.l.b16 %v553
        %v812 = vunpack.c.l.b16 %v554
        %v813 = vunpack.c.l.b16 %v555
        %v814 = vunpack.c.l.b16 %v556
        %v815 = vunpack.c.l.b16 %v557
        %v816 = vunpack.c.l.b16 %v558
        %v817 = vunpack.c.l.b16 %v559
        %v818 = vunpack.c.l.b16 %v560
        %v819 = vunpack.c.l.b16 %v561
        %v820 = vunpack.c.l.b16 %v562
        %v821 = vunpack.c.l.b16 %v563
        %v822 = vunpack.c.l.b16 %v564
        %v823 = vunpack.c.l.b16 %v565
        %v824 = vunpack.c.l.b16 %v566
        %v825 = vunpack.c.l.b16 %v567
        %v826 = vunpack.c.l.b16 %v568
        %v827 = vunpack.c.l.b16 %v569
        %v828 = vunpack.c.l.b16 %v570
        %v829 = vunpack.c.l.b16 %v571
        %v830 = vunpack.c.l.b16 %v572
        %v831 = vunpack.c.l.b16 %v573
        %v832 = vunpack.c.l.b16 %v574
        %v833 = vpack.c.b16 %v802, %v801
        %v834 = vpack.c.b16 %v804, %v803
        %v835 = vpack.c.b16 %v806, %v805
        %v836 = vpack.c.b16 %v808, %v807
        %v837 = vpack.c.b16 %v810, %v809
        %v838 = vpack.c.b16 %v812, %v811
        %v839 = vpack.c.b16 %v814, %v813
        %v840 = vpack.c.b16 %v816, %v815
        %v841 = vpack.c.b16 %v818, %v817
        %v842 = vpack.c.b16 %v820, %v819
        %v843 = vpack.c.b16 %v822, %v821
        %v844 = vpack.c.b16 %v824, %v823
        %v845 = vpack.c.b16 %v826, %v825
        %v846 = vpack.c.b16 %v828, %v827
        %v847 = vpack.c.b16 %v830, %v829
        %v848 = vpack.c.b16 %v832, %v831
        %865 = vmatprep.subr.bf16.mxu0 0
        %866 = vmatpush1.bf16.msra.mxu0 %v833
        %867 = vmatprep.subr.bf16.mxu0 0
        %868 = vmatpush1.bf16.msra.mxu0 %v834
        %869 = vmatprep.subr.bf16.mxu0 0
        %870 = vmatpush1.bf16.msra.mxu0 %v835
        %871 = vmatprep.subr.bf16.mxu0 0
        %872 = vmatpush1.bf16.msra.mxu0 %v836
        %873 = vmatprep.subr.bf16.mxu0 0
        %874 = vmatpush1.bf16.msra.mxu0 %v837
        %875 = vmatprep.subr.bf16.mxu0 0
        %876 = vmatpush1.bf16.msra.mxu0 %v838
        %877 = vmatprep.subr.bf16.mxu0 0
        %878 = vmatpush1.bf16.msra.mxu0 %v839
        %879 = vmatprep.subr.bf16.mxu0 0
        %880 = vmatpush1.bf16.msra.mxu0 %v840
        %881 = vmatprep.subr.bf16.mxu0 0
        %882 = vmatpush1.bf16.msra.mxu0 %v841
        %883 = vmatprep.subr.bf16.mxu0 0
        %884 = vmatpush1.bf16.msra.mxu0 %v842
        %885 = vmatprep.subr.bf16.mxu0 0
        %886 = vmatpush1.bf16.msra.mxu0 %v843
        %887 = vmatprep.subr.bf16.mxu0 0
        %888 = vmatpush1.bf16.msra.mxu0 %v844
        %889 = vmatprep.subr.bf16.mxu0 0
        %890 = vmatpush1.bf16.msra.mxu0 %v845
        %891 = vmatprep.subr.bf16.mxu0 0
        %892 = vmatpush1.bf16.msra.mxu0 %v846
        %893 = vmatprep.subr.bf16.mxu0 0
        %894 = vmatpush1.bf16.msra.mxu0 %v847
        %895 = vmatprep.subr.bf16.mxu0 0
        %896 = vmatpush1.bf16.msra.mxu0 %v848
        %897 = vmatprep.mubr.bf16.mxu0 %v706
        %898 = vmatmul.mubr.bf16.gmra.mrb[0].mxu0 %v705
        %v899 = vpop.f32.mrb[0].mxu0
        %v900 = vadd.f32 0.0, %v899
        %v901 = vpop.f32.mrb[0].mxu0
        %v902 = vpop.f32.mrb[0].mxu0
        %v903 = vadd.f32 0.0, %v902
        %v904 = vpop.f32.mrb[0].mxu0
        %905 = vmatprep.mubr.bf16.mxu0 %v708
        %906 = vmatmul.mubr.bf16.gmra.mrb[0].mxu0 %v707
        %v907 = vpop.f32.mrb[0].mxu0
        %v908 = vadd.f32 0.0, %v907
        %v909 = vpop.f32.mrb[0].mxu0
        %v910 = vpop.f32.mrb[0].mxu0
        %v911 = vadd.f32 0.0, %v910
        %v912 = vpop.f32.mrb[0].mxu0
        %913 = vmatprep.mubr.bf16.mxu0 %v710
        %914 = vmatmul.mubr.bf16.gmra.mrb[0].mxu0 %v709
        %v915 = vpop.f32.mrb[0].mxu0
        %v916 = vadd.f32 0.0, %v915
        %v917 = vpop.f32.mrb[0].mxu0
        %v918 = vpop.f32.mrb[0].mxu0
        %v919 = vadd.f32 0.0, %v918
        %v920 = vpop.f32.mrb[0].mxu0
        %921 = vmatprep.mubr.bf16.mxu0 %v712
        %922 = vmatmul.mubr.bf16.gmra.mrb[0].mxu0 %v711
        %v923 = vpop.f32.mrb[0].mxu0
        %v924 = vadd.f32 0.0, %v923
        %v925 = vpop.f32.mrb[0].mxu0
        %v926 = vpop.f32.mrb[0].mxu0
        %v927 = vadd.f32 0.0, %v926
        %v928 = vpop.f32.mrb[0].mxu0
        %929 = vmatprep.mubr.bf16.mxu0 %v714
        %930 = vmatmul.mubr.bf16.gmra.mrb[0].mxu0 %v713
        %v931 = vpop.f32.mrb[0].mxu0
        %v932 = vadd.f32 0.0, %v931
        %v933 = vpop.f32.mrb[0].mxu0
        %v934 = vpop.f32.mrb[0].mxu0
        %v935 = vadd.f32 0.0, %v934
        %v936 = vpop.f32.mrb[0].mxu0
        %937 = vmatprep.mubr.bf16.mxu0 %v716
        %938 = vmatmul.mubr.bf16.gmra.mrb[0].mxu0 %v715
        %v939 = vpop.f32.mrb[0].mxu0
        %v940 = vadd.f32 0.0, %v939
        %v941 = vpop.f32.mrb[0].mxu0
        %v942 = vpop.f32.mrb[0].mxu0
        %v943 = vadd.f32 0.0, %v942
        %v944 = vpop.f32.mrb[0].mxu0
        %945 = vmatprep.mubr.bf16.mxu0 %v718
        %946 = vmatmul.mubr.bf16.gmra.mrb[0].mxu0 %v717
        %v947 = vpop.f32.mrb[0].mxu0
        %v948 = vadd.f32 0.0, %v947
        %v949 = vpop.f32.mrb[0].mxu0
        %v950 = vpop.f32.mrb[0].mxu0
        %v951 = vadd.f32 0.0, %v950
        %v952 = vpop.f32.mrb[0].mxu0
        %953 = vmatprep.mubr.bf16.mxu0 %v720
        %954 = vmatmul.mubr.bf16.gmra.mrb[0].mxu0 %v719
        %v955 = vpop.f32.mrb[0].mxu0
        %v956 = vadd.f32 0.0, %v955
        %v957 = vpop.f32.mrb[0].mxu0
        %v958 = vpop.f32.mrb[0].mxu0
        %v959 = vadd.f32 0.0, %v958
        %v960 = vpop.f32.mrb[0].mxu0
        %961 = vmatprep.mubr.bf16.mxu0 %v722
        %962 = vmatmul.mubr.bf16.gmra.mrb[0].mxu0 %v721
        %v963 = vpop.f32.mrb[0].mxu0
        %v964 = vadd.f32 0.0, %v963
        %v965 = vpop.f32.mrb[0].mxu0
        %v966 = vpop.f32.mrb[0].mxu0
        %v967 = vadd.f32 0.0, %v966
        %v968 = vpop.f32.mrb[0].mxu0
        %969 = vmatprep.mubr.bf16.mxu0 %v724
        %970 = vmatmul.mubr.bf16.gmra.mrb[0].mxu0 %v723
        %v971 = vpop.f32.mrb[0].mxu0
        %v972 = vadd.f32 0.0, %v971
        %v973 = vpop.f32.mrb[0].mxu0
        %v974 = vpop.f32.mrb[0].mxu0
        %v975 = vadd.f32 0.0, %v974
        %v976 = vpop.f32.mrb[0].mxu0
        %977 = vmatprep.mubr.bf16.mxu0 %v726
        %978 = vmatmul.mubr.bf16.gmra.mrb[0].mxu0 %v725
        %v979 = vpop.f32.mrb[0].mxu0
        %v980 = vadd.f32 0.0, %v979
        %v981 = vpop.f32.mrb[0].mxu0
        %v982 = vpop.f32.mrb[0].mxu0
        %v983 = vadd.f32 0.0, %v982
        %v984 = vpop.f32.mrb[0].mxu0
        %985 = vmatprep.mubr.bf16.mxu0 %v728
        %986 = vmatmul.mubr.bf16.gmra.mrb[0].mxu0 %v727
        %v987 = vpop.f32.mrb[0].mxu0
        %v988 = vadd.f32 0.0, %v987
        %v989 = vpop.f32.mrb[0].mxu0
        %v990 = vpop.f32.mrb[0].mxu0
        %v991 = vadd.f32 0.0, %v990
        %v992 = vpop.f32.mrb[0].mxu0
        %993 = vmatprep.mubr.bf16.mxu0 %v730
        %994 = vmatmul.mubr.bf16.gmra.mrb[0].mxu0 %v729
        %v995 = vpop.f32.mrb[0].mxu0
        %v996 = vadd.f32 0.0, %v995
        %v997 = vpop.f32.mrb[0].mxu0
        %v998 = vpop.f32.mrb[0].mxu0
        %v999 = vadd.f32 0.0, %v998
        %v1000 = vpop.f32.mrb[0].mxu0
        %1001 = vmatprep.mubr.bf16.mxu0 %v732
        %1002 = vmatmul.mubr.bf16.gmra.mrb[0].mxu0 %v731
        %v1003 = vpop.f32.mrb[0].mxu0
        %v1004 = vadd.f32 0.0, %v1003
        %v1005 = vpop.f32.mrb[0].mxu0
        %v1006 = vpop.f32.mrb[0].mxu0
        %v1007 = vadd.f32 0.0, %v1006
        %v1008 = vpop.f32.mrb[0].mxu0
        %1009 = vmatprep.mubr.bf16.mxu0 %v734
        %1010 = vmatmul.mubr.bf16.gmra.mrb[0].mxu0 %v733
        %v1011 = vpop.f32.mrb[0].mxu0
        %v1012 = vadd.f32 0.0, %v1011
        %v1013 = vpop.f32.mrb[0].mxu0
        %v1014 = vpop.f32.mrb[0].mxu0
        %v1015 = vadd.f32 0.0, %v1014
        %v1016 = vpop.f32.mrb[0].mxu0
        %1017 = vmatprep.mubr.bf16.mxu0 %v736
        %1018 = vmatmul.mubr.bf16.gmra.mrb[0].mxu0 %v735
        %v1019 = vpop.f32.mrb[0].mxu0
        %v1020 = vadd.f32 0.0, %v1019
        %v1021 = vpop.f32.mrb[0].mxu0
        %v1022 = vpop.f32.mrb[0].mxu0
        %v1023 = vadd.f32 0.0, %v1022
        %v1024 = vpop.f32.mrb[0].mxu0
        %1025 = vdwg.mxu0
        %v1026 = vpack.c.bf16 %v903, %v900
        %v1027 = vpack.c.bf16 %v911, %v908
        %v1028 = vpack.c.bf16 %v919, %v916
        %v1029 = vpack.c.bf16 %v927, %v924
        %v1030 = vpack.c.bf16 %v935, %v932
        %v1031 = vpack.c.bf16 %v943, %v940
        %v1032 = vpack.c.bf16 %v951, %v948
        %v1033 = vpack.c.bf16 %v959, %v956
        %v1034 = vpack.c.bf16 %v967, %v964
        %v1035 = vpack.c.bf16 %v975, %v972
        %v1036 = vpack.c.bf16 %v983, %v980
        %v1037 = vpack.c.bf16 %v991, %v988
        %v1038 = vpack.c.bf16 %v999, %v996
        %v1039 = vpack.c.bf16 %v1007, %v1004
        %v1040 = vpack.c.bf16 %v1015, %v1012
        %v1041 = vpack.c.bf16 %v1023, %v1020
        %v1042 = vld [vmem:[#allocation8] sm:$0xf]
        %v1043 = vld [vmem:[#allocation8 + $0x4] sm:$0xf]
        %v1044 = vld [vmem:[#allocation8 + $0x8] sm:$0xf]
        %v1045 = vld [vmem:[#allocation8 + $0xc] sm:$0xf]
        %v1046 = vld [vmem:[#allocation8 + $0x10] sm:$0xf]
        %v1047 = vld [vmem:[#allocation8 + $0x14] sm:$0xf]
        %v1048 = vld [vmem:[#allocation8 + $0x18] sm:$0xf]
        %v1049 = vld [vmem:[#allocation8 + $0x1c] sm:$0xf]
        %v1050 = vld [vmem:[#allocation8 + $0x20] sm:$0xf]
        %v1051 = vld [vmem:[#allocation8 + $0x24] sm:$0xf]
        %v1052 = vld [vmem:[#allocation8 + $0x28] sm:$0xf]
        %v1053 = vld [vmem:[#allocation8 + $0x2c] sm:$0xf]
        %v1054 = vld [vmem:[#allocation8 + $0x30] sm:$0xf]
        %v1055 = vld [vmem:[#allocation8 + $0x34] sm:$0xf]
        %v1056 = vld [vmem:[#allocation8 + $0x38] sm:$0xf]
        %v1057 = vld [vmem:[#allocation8 + $0x3c] sm:$0xf]
        %v1058 = vld [vmem:[%s4] sm:$0x1]
        %v1060 = vlaneseq
        %v1061 = vshrl.u32 %v1060, 7
        %v1062 = vsub.s32 0, %v1061
        %v1063 = vrot.slane %v1058, %v1062
        %v1081 = vunpack.c.l.b16 %v1042
        %v1082 = vunpack.c.l.b16 %v1043
        %v1083 = vunpack.c.l.b16 %v1044
        %v1084 = vunpack.c.l.b16 %v1045
        %v1085 = vunpack.c.l.b16 %v1046
        %v1086 = vunpack.c.l.b16 %v1047
        %v1087 = vunpack.c.l.b16 %v1048
        %v1088 = vunpack.c.l.b16 %v1049
        %v1089 = vunpack.c.l.b16 %v1050
        %v1090 = vunpack.c.l.b16 %v1051
        %v1091 = vunpack.c.l.b16 %v1052
        %v1092 = vunpack.c.l.b16 %v1053
        %v1093 = vunpack.c.l.b16 %v1054
        %v1094 = vunpack.c.l.b16 %v1055
        %v1095 = vunpack.c.l.b16 %v1056
        %v1096 = vunpack.c.l.b16 %v1057
        %v1097 = vpack.c.b16 %v1082, %v1081
        %v1098 = vpack.c.b16 %v1084, %v1083
        %v1099 = vpack.c.b16 %v1086, %v1085
        %v1100 = vpack.c.b16 %v1088, %v1087
        %v1101 = vpack.c.b16 %v1090, %v1089
        %v1102 = vpack.c.b16 %v1092, %v1091
        %v1103 = vpack.c.b16 %v1094, %v1093
        %v1104 = vpack.c.b16 %v1096, %v1095
        %1113 = vmatprep.subr.bf16.mxu0 0
        %1114 = vmatpush1.bf16.msra.mxu0 %v1097
        %1115 = vmatprep.subr.bf16.mxu0 0
        %1116 = vmatpush1.bf16.msra.mxu0 %v1098
        %1117 = vmatprep.subr.bf16.mxu0 0
        %1118 = vmatpush1.bf16.msra.mxu0 %v1099
        %1119 = vmatprep.subr.bf16.mxu0 0
        %1120 = vmatpush1.bf16.msra.mxu0 %v1100
        %1121 = vmatprep.subr.bf16.mxu0 0
        %1122 = vmatpush1.bf16.msra.mxu0 %v1101
        %1123 = vmatprep.subr.bf16.mxu0 0
        %1124 = vmatpush1.bf16.msra.mxu0 %v1102
        %1125 = vmatprep.subr.bf16.mxu0 0
        %1126 = vmatpush1.bf16.msra.mxu0 %v1103
        %1127 = vmatprep.subr.bf16.mxu0 0
        %1128 = vmatpush1.bf16.msra.mxu0 %v1104
        %1129 = vmatprep.subr.bf16.mxu0 0
        %1130 = vmatpush1.bf16.msra.mxu0 0
        %1131 = vmatprep.subr.bf16.mxu0 0
        %1132 = vmatpush1.bf16.msra.mxu0 0
        %1133 = vmatprep.subr.bf16.mxu0 0
        %1134 = vmatpush1.bf16.msra.mxu0 0
        %1135 = vmatprep.subr.bf16.mxu0 0
        %1136 = vmatpush1.bf16.msra.mxu0 0
        %1137 = vmatprep.subr.bf16.mxu0 0
        %1138 = vmatpush1.bf16.msra.mxu0 0
        %1139 = vmatprep.subr.bf16.mxu0 0
        %1140 = vmatpush1.bf16.msra.mxu0 0
        %1141 = vmatprep.subr.bf16.mxu0 0
        %1142 = vmatpush1.bf16.msra.mxu0 0
        %1143 = vmatprep.subr.bf16.mxu0 0
        %1144 = vmatpush1.bf16.msra.mxu0 0
        %1145 = vmatprep.mubr.bf16.mxu0 0
        %1146 = vmatmul.mubr.bf16.gmra.mrb[0].mxu0 %v1026
        %v1147 = vpop.f32.mrb[0].mxu0
        %v1148 = vadd.f32 %v1063, %v1147
        %v1149 = vpop.f32.mrb[0].mxu0
        %v1150 = vpop.f32.mrb[0].mxu0
        %v1151 = vadd.f32 %v1063, %v1150
        %v1152 = vpop.f32.mrb[0].mxu0
        %1153 = vmatprep.mubr.bf16.mxu0 0
        %1154 = vmatmul.mubr.bf16.gmra.mrb[0].mxu0 %v1027
        %v1155 = vpop.f32.mrb[0].mxu0
        %v1156 = vadd.f32 %v1063, %v1155
        %v1157 = vpop.f32.mrb[0].mxu0
        %v1158 = vpop.f32.mrb[0].mxu0
        %v1159 = vadd.f32 %v1063, %v1158
        %v1160 = vpop.f32.mrb[0].mxu0
        %1161 = vmatprep.mubr.bf16.mxu0 0
        %1162 = vmatmul.mubr.bf16.gmra.mrb[0].mxu0 %v1028
        %v1163 = vpop.f32.mrb[0].mxu0
        %v1164 = vadd.f32 %v1063, %v1163
        %v1165 = vpop.f32.mrb[0].mxu0
        %v1166 = vpop.f32.mrb[0].mxu0
        %v1167 = vadd.f32 %v1063, %v1166
        %v1168 = vpop.f32.mrb[0].mxu0
        %1169 = vmatprep.mubr.bf16.mxu0 0
        %1170 = vmatmul.mubr.bf16.gmra.mrb[0].mxu0 %v1029
        %v1171 = vpop.f32.mrb[0].mxu0
        %v1172 = vadd.f32 %v1063, %v1171
        %v1173 = vpop.f32.mrb[0].mxu0
        %v1174 = vpop.f32.mrb[0].mxu0
        %v1175 = vadd.f32 %v1063, %v1174
        %v1176 = vpop.f32.mrb[0].mxu0
        %1177 = vmatprep.mubr.bf16.mxu0 0
        %1178 = vmatmul.mubr.bf16.gmra.mrb[0].mxu0 %v1030
        %v1179 = vpop.f32.mrb[0].mxu0
        %v1180 = vadd.f32 %v1063, %v1179
        %v1181 = vpop.f32.mrb[0].mxu0
        %v1182 = vpop.f32.mrb[0].mxu0
        %v1183 = vadd.f32 %v1063, %v1182
        %v1184 = vpop.f32.mrb[0].mxu0
        %1185 = vmatprep.mubr.bf16.mxu0 0
        %1186 = vmatmul.mubr.bf16.gmra.mrb[0].mxu0 %v1031
        %v1187 = vpop.f32.mrb[0].mxu0
        %v1188 = vadd.f32 %v1063, %v1187
        %v1189 = vpop.f32.mrb[0].mxu0
        %v1190 = vpop.f32.mrb[0].mxu0
        %v1191 = vadd.f32 %v1063, %v1190
        %v1192 = vpop.f32.mrb[0].mxu0
        %1193 = vmatprep.mubr.bf16.mxu0 0
        %1194 = vmatmul.mubr.bf16.gmra.mrb[0].mxu0 %v1032
        %v1195 = vpop.f32.mrb[0].mxu0
        %v1196 = vadd.f32 %v1063, %v1195
        %v1197 = vpop.f32.mrb[0].mxu0
        %v1198 = vpop.f32.mrb[0].mxu0
        %v1199 = vadd.f32 %v1063, %v1198
        %v1200 = vpop.f32.mrb[0].mxu0
        %1201 = vmatprep.mubr.bf16.mxu0 0
        %1202 = vmatmul.mubr.bf16.gmra.mrb[0].mxu0 %v1033
        %v1203 = vpop.f32.mrb[0].mxu0
        %v1204 = vadd.f32 %v1063, %v1203
        %v1205 = vpop.f32.mrb[0].mxu0
        %v1206 = vpop.f32.mrb[0].mxu0
        %v1207 = vadd.f32 %v1063, %v1206
        %v1208 = vpop.f32.mrb[0].mxu0
        %1209 = vmatprep.mubr.bf16.mxu0 0
        %1210 = vmatmul.mubr.bf16.gmra.mrb[0].mxu0 %v1034
        %v1211 = vpop.f32.mrb[0].mxu0
        %v1212 = vadd.f32 %v1063, %v1211
        %v1213 = vpop.f32.mrb[0].mxu0
        %v1214 = vpop.f32.mrb[0].mxu0
        %v1215 = vadd.f32 %v1063, %v1214
        %v1216 = vpop.f32.mrb[0].mxu0
        %1217 = vmatprep.mubr.bf16.mxu0 0
        %1218 = vmatmul.mubr.bf16.gmra.mrb[0].mxu0 %v1035
        %v1219 = vpop.f32.mrb[0].mxu0
        %v1220 = vadd.f32 %v1063, %v1219
        %v1221 = vpop.f32.mrb[0].mxu0
        %v1222 = vpop.f32.mrb[0].mxu0
        %v1223 = vadd.f32 %v1063, %v1222
        %v1224 = vpop.f32.mrb[0].mxu0
        %1225 = vmatprep.mubr.bf16.mxu0 0
        %1226 = vmatmul.mubr.bf16.gmra.mrb[0].mxu0 %v1036
        %v1227 = vpop.f32.mrb[0].mxu0
        %v1228 = vadd.f32 %v1063, %v1227
        %v1229 = vpop.f32.mrb[0].mxu0
        %v1230 = vpop.f32.mrb[0].mxu0
        %v1231 = vadd.f32 %v1063, %v1230
        %v1232 = vpop.f32.mrb[0].mxu0
        %1233 = vmatprep.mubr.bf16.mxu0 0
        %1234 = vmatmul.mubr.bf16.gmra.mrb[0].mxu0 %v1037
        %v1235 = vpop.f32.mrb[0].mxu0
        %v1236 = vadd.f32 %v1063, %v1235
        %v1237 = vpop.f32.mrb[0].mxu0
        %v1238 = vpop.f32.mrb[0].mxu0
        %v1239 = vadd.f32 %v1063, %v1238
        %v1240 = vpop.f32.mrb[0].mxu0
        %1241 = vmatprep.mubr.bf16.mxu0 0
        %1242 = vmatmul.mubr.bf16.gmra.mrb[0].mxu0 %v1038
        %v1243 = vpop.f32.mrb[0].mxu0
        %v1244 = vadd.f32 %v1063, %v1243
        %v1245 = vpop.f32.mrb[0].mxu0
        %v1246 = vpop.f32.mrb[0].mxu0
        %v1247 = vadd.f32 %v1063, %v1246
        %v1248 = vpop.f32.mrb[0].mxu0
        %1249 = vmatprep.mubr.bf16.mxu0 0
        %1250 = vmatmul.mubr.bf16.gmra.mrb[0].mxu0 %v1039
        %v1251 = vpop.f32.mrb[0].mxu0
        %v1252 = vadd.f32 %v1063, %v1251
        %v1253 = vpop.f32.mrb[0].mxu0
        %v1254 = vpop.f32.mrb[0].mxu0
        %v1255 = vadd.f32 %v1063, %v1254
        %v1256 = vpop.f32.mrb[0].mxu0
        %1257 = vmatprep.mubr.bf16.mxu0 0
        %1258 = vmatmul.mubr.bf16.gmra.mrb[0].mxu0 %v1040
        %v1259 = vpop.f32.mrb[0].mxu0
        %v1260 = vadd.f32 %v1063, %v1259
        %v1261 = vpop.f32.mrb[0].mxu0
        %v1262 = vpop.f32.mrb[0].mxu0
        %v1263 = vadd.f32 %v1063, %v1262
        %v1264 = vpop.f32.mrb[0].mxu0
        %1265 = vmatprep.mubr.bf16.mxu0 0
        %1266 = vmatmul.mubr.bf16.gmra.mrb[0].mxu0 %v1041
        %v1267 = vpop.f32.mrb[0].mxu0
        %v1268 = vadd.f32 %v1063, %v1267
        %v1269 = vpop.f32.mrb[0].mxu0
        %v1270 = vpop.f32.mrb[0].mxu0
        %v1271 = vadd.f32 %v1063, %v1270
        %v1272 = vpop.f32.mrb[0].mxu0
        %1273 = vdwg.mxu0
        %v1274 = vmax.f32 %v1148, 0.0
        %v1275 = vmax.f32 %v1151, 0.0
        %v1276 = vmax.f32 %v1156, 0.0
        %v1277 = vmax.f32 %v1159, 0.0
        %v1278 = vmax.f32 %v1164, 0.0
        %v1279 = vmax.f32 %v1167, 0.0
        %v1280 = vmax.f32 %v1172, 0.0
        %v1281 = vmax.f32 %v1175, 0.0
        %v1282 = vmax.f32 %v1180, 0.0
        %v1283 = vmax.f32 %v1183, 0.0
        %v1284 = vmax.f32 %v1188, 0.0
        %v1285 = vmax.f32 %v1191, 0.0
        %v1286 = vmax.f32 %v1196, 0.0
        %v1287 = vmax.f32 %v1199, 0.0
        %v1288 = vmax.f32 %v1204, 0.0
        %v1289 = vmax.f32 %v1207, 0.0
        %v1290 = vmax.f32 %v1212, 0.0
        %v1291 = vmax.f32 %v1215, 0.0
        %v1292 = vmax.f32 %v1220, 0.0
        %v1293 = vmax.f32 %v1223, 0.0
        %v1294 = vmax.f32 %v1228, 0.0
        %v1295 = vmax.f32 %v1231, 0.0
        %v1296 = vmax.f32 %v1236, 0.0
        %v1297 = vmax.f32 %v1239, 0.0
        %v1298 = vmax.f32 %v1244, 0.0
        %v1299 = vmax.f32 %v1247, 0.0
        %v1300 = vmax.f32 %v1252, 0.0
        %v1301 = vmax.f32 %v1255, 0.0
        %v1302 = vmax.f32 %v1260, 0.0
        %v1303 = vmax.f32 %v1263, 0.0
        %v1304 = vmax.f32 %v1268, 0.0
        %v1305 = vmax.f32 %v1271, 0.0
        %v1306 = vpack.c.bf16 %v1275, %v1274
        %v1307 = vpack.c.bf16 %v1277, %v1276
        %v1308 = vpack.c.bf16 %v1279, %v1278
        %v1309 = vpack.c.bf16 %v1281, %v1280
        %v1310 = vpack.c.bf16 %v1283, %v1282
        %v1311 = vpack.c.bf16 %v1285, %v1284
        %v1312 = vpack.c.bf16 %v1287, %v1286
        %v1313 = vpack.c.bf16 %v1289, %v1288
        %v1314 = vpack.c.bf16 %v1291, %v1290
        %v1315 = vpack.c.bf16 %v1293, %v1292
        %v1316 = vpack.c.bf16 %v1295, %v1294
        %v1317 = vpack.c.bf16 %v1297, %v1296
        %v1318 = vpack.c.bf16 %v1299, %v1298
        %v1319 = vpack.c.bf16 %v1301, %v1300
        %v1320 = vpack.c.bf16 %v1303, %v1302
        %v1321 = vpack.c.bf16 %v1305, %v1304
        %v1322 = vld [vmem:[#allocation10] sm:$0xf]
        %v1323 = vld [vmem:[#allocation10 + $0x4] sm:$0xf]
        %v1324 = vld [vmem:[#allocation10 + $0x8] sm:$0xf]
        %v1325 = vld [vmem:[#allocation10 + $0xc] sm:$0xf]
        %v1326 = vld [vmem:[#allocation10 + $0x10] sm:$0xf]
        %v1327 = vld [vmem:[#allocation10 + $0x14] sm:$0xf]
        %v1328 = vld [vmem:[#allocation10 + $0x18] sm:$0xf]
        %v1329 = vld [vmem:[#allocation10 + $0x1c] sm:$0xf]
        %v1330 = vld [vmem:[#allocation10 + $0x20] sm:$0xf]
        %v1331 = vld [vmem:[#allocation10 + $0x24] sm:$0xf]
        %v1332 = vld [vmem:[#allocation10 + $0x28] sm:$0xf]
        %v1333 = vld [vmem:[#allocation10 + $0x2c] sm:$0xf]
        %v1334 = vld [vmem:[#allocation10 + $0x30] sm:$0xf]
        %v1335 = vld [vmem:[#allocation10 + $0x34] sm:$0xf]
        %v1336 = vld [vmem:[#allocation10 + $0x38] sm:$0xf]
        %v1337 = vld [vmem:[#allocation10 + $0x3c] sm:$0xf]
        %v1338 = vld [vmem:[%s6] sm:$0x1]
        %v1340 = vlaneseq
        %v1341 = vshrl.u32 %v1340, 7
        %v1342 = vsub.s32 0, %v1341
        %v1343 = vrot.slane %v1338, %v1342
        %v1361 = vunpack.c.l.b16 %v1322
        %v1362 = vunpack.c.l.b16 %v1323
        %v1363 = vunpack.c.l.b16 %v1324
        %v1364 = vunpack.c.l.b16 %v1325
        %v1365 = vunpack.c.l.b16 %v1326
        %v1366 = vunpack.c.l.b16 %v1327
        %v1367 = vunpack.c.l.b16 %v1328
        %v1368 = vunpack.c.l.b16 %v1329
        %v1369 = vunpack.c.l.b16 %v1330
        %v1370 = vunpack.c.l.b16 %v1331
        %v1371 = vunpack.c.l.b16 %v1332
        %v1372 = vunpack.c.l.b16 %v1333
        %v1373 = vunpack.c.l.b16 %v1334
        %v1374 = vunpack.c.l.b16 %v1335
        %v1375 = vunpack.c.l.b16 %v1336
        %v1376 = vunpack.c.l.b16 %v1337
        %v1377 = vpack.c.b16 %v1362, %v1361
        %v1378 = vpack.c.b16 %v1364, %v1363
        %v1379 = vpack.c.b16 %v1366, %v1365
        %v1380 = vpack.c.b16 %v1368, %v1367
        %v1381 = vpack.c.b16 %v1370, %v1369
        %v1382 = vpack.c.b16 %v1372, %v1371
        %v1383 = vpack.c.b16 %v1374, %v1373
        %v1384 = vpack.c.b16 %v1376, %v1375
        %1393 = vmatprep.subr.bf16.mxu0 0
        %1394 = vmatpush1.bf16.msra.mxu0 %v1377
        %1395 = vmatprep.subr.bf16.mxu0 0
        %1396 = vmatpush1.bf16.msra.mxu0 %v1378
        %1397 = vmatprep.subr.bf16.mxu0 0
        %1398 = vmatpush1.bf16.msra.mxu0 %v1379
        %1399 = vmatprep.subr.bf16.mxu0 0
        %1400 = vmatpush1.bf16.msra.mxu0 %v1380
        %1401 = vmatprep.subr.bf16.mxu0 0
        %1402 = vmatpush1.bf16.msra.mxu0 %v1381
        %1403 = vmatprep.subr.bf16.mxu0 0
        %1404 = vmatpush1.bf16.msra.mxu0 %v1382
        %1405 = vmatprep.subr.bf16.mxu0 0
        %1406 = vmatpush1.bf16.msra.mxu0 %v1383
        %1407 = vmatprep.subr.bf16.mxu0 0
        %1408 = vmatpush1.bf16.msra.mxu0 %v1384
        %1409 = vmatprep.subr.bf16.mxu0 0
        %1410 = vmatpush1.bf16.msra.mxu0 0
        %1411 = vmatprep.subr.bf16.mxu0 0
        %1412 = vmatpush1.bf16.msra.mxu0 0
        %1413 = vmatprep.subr.bf16.mxu0 0
        %1414 = vmatpush1.bf16.msra.mxu0 0
        %1415 = vmatprep.subr.bf16.mxu0 0
        %1416 = vmatpush1.bf16.msra.mxu0 0
        %1417 = vmatprep.subr.bf16.mxu0 0
        %1418 = vmatpush1.bf16.msra.mxu0 0
        %1419 = vmatprep.subr.bf16.mxu0 0
        %1420 = vmatpush1.bf16.msra.mxu0 0
        %1421 = vmatprep.subr.bf16.mxu0 0
        %1422 = vmatpush1.bf16.msra.mxu0 0
        %1423 = vmatprep.subr.bf16.mxu0 0
        %1424 = vmatpush1.bf16.msra.mxu0 0
        %1425 = vmatprep.mubr.bf16.mxu0 0
        %1426 = vmatmul.mubr.bf16.gmra.mrb[0].mxu0 %v1306
        %v1427 = vpop.f32.mrb[0].mxu0
        %v1428 = vadd.f32 %v1343, %v1427
        %v1429 = vpop.f32.mrb[0].mxu0
        %v1430 = vpop.f32.mrb[0].mxu0
        %v1431 = vadd.f32 %v1343, %v1430
        %v1432 = vpop.f32.mrb[0].mxu0
        %1433 = vmatprep.mubr.bf16.mxu0 0
        %1434 = vmatmul.mubr.bf16.gmra.mrb[0].mxu0 %v1307
        %v1435 = vpop.f32.mrb[0].mxu0
        %v1436 = vadd.f32 %v1343, %v1435
        %v1437 = vpop.f32.mrb[0].mxu0
        %v1438 = vpop.f32.mrb[0].mxu0
        %v1439 = vadd.f32 %v1343, %v1438
        %v1440 = vpop.f32.mrb[0].mxu0
        %1441 = vmatprep.mubr.bf16.mxu0 0
        %1442 = vmatmul.mubr.bf16.gmra.mrb[0].mxu0 %v1308
        %v1443 = vpop.f32.mrb[0].mxu0
        %v1444 = vadd.f32 %v1343, %v1443
        %v1445 = vpop.f32.mrb[0].mxu0
        %v1446 = vpop.f32.mrb[0].mxu0
        %v1447 = vadd.f32 %v1343, %v1446
        %v1448 = vpop.f32.mrb[0].mxu0
        %1449 = vmatprep.mubr.bf16.mxu0 0
        %1450 = vmatmul.mubr.bf16.gmra.mrb[0].mxu0 %v1309
        %v1451 = vpop.f32.mrb[0].mxu0
        %v1452 = vadd.f32 %v1343, %v1451
        %v1453 = vpop.f32.mrb[0].mxu0
        %v1454 = vpop.f32.mrb[0].mxu0
        %v1455 = vadd.f32 %v1343, %v1454
        %v1456 = vpop.f32.mrb[0].mxu0
        %1457 = vmatprep.mubr.bf16.mxu0 0
        %1458 = vmatmul.mubr.bf16.gmra.mrb[0].mxu0 %v1310
        %v1459 = vpop.f32.mrb[0].mxu0
        %v1460 = vadd.f32 %v1343, %v1459
        %v1461 = vpop.f32.mrb[0].mxu0
        %v1462 = vpop.f32.mrb[0].mxu0
        %v1463 = vadd.f32 %v1343, %v1462
        %v1464 = vpop.f32.mrb[0].mxu0
        %1465 = vmatprep.mubr.bf16.mxu0 0
        %1466 = vmatmul.mubr.bf16.gmra.mrb[0].mxu0 %v1311
        %v1467 = vpop.f32.mrb[0].mxu0
        %v1468 = vadd.f32 %v1343, %v1467
        %v1469 = vpop.f32.mrb[0].mxu0
        %v1470 = vpop.f32.mrb[0].mxu0
        %v1471 = vadd.f32 %v1343, %v1470
        %v1472 = vpop.f32.mrb[0].mxu0
        %1473 = vmatprep.mubr.bf16.mxu0 0
        %1474 = vmatmul.mubr.bf16.gmra.mrb[0].mxu0 %v1312
        %v1475 = vpop.f32.mrb[0].mxu0
        %v1476 = vadd.f32 %v1343, %v1475
        %v1477 = vpop.f32.mrb[0].mxu0
        %v1478 = vpop.f32.mrb[0].mxu0
        %v1479 = vadd.f32 %v1343, %v1478
        %v1480 = vpop.f32.mrb[0].mxu0
        %1481 = vmatprep.mubr.bf16.mxu0 0
        %1482 = vmatmul.mubr.bf16.gmra.mrb[0].mxu0 %v1313
        %v1483 = vpop.f32.mrb[0].mxu0
        %v1484 = vadd.f32 %v1343, %v1483
        %v1485 = vpop.f32.mrb[0].mxu0
        %v1486 = vpop.f32.mrb[0].mxu0
        %v1487 = vadd.f32 %v1343, %v1486
        %v1488 = vpop.f32.mrb[0].mxu0
        %1489 = vmatprep.mubr.bf16.mxu0 0
        %1490 = vmatmul.mubr.bf16.gmra.mrb[0].mxu0 %v1314
        %v1491 = vpop.f32.mrb[0].mxu0
        %v1492 = vadd.f32 %v1343, %v1491
        %v1493 = vpop.f32.mrb[0].mxu0
        %v1494 = vpop.f32.mrb[0].mxu0
        %v1495 = vadd.f32 %v1343, %v1494
        %v1496 = vpop.f32.mrb[0].mxu0
        %1497 = vmatprep.mubr.bf16.mxu0 0
        %1498 = vmatmul.mubr.bf16.gmra.mrb[0].mxu0 %v1315
        %v1499 = vpop.f32.mrb[0].mxu0
        %v1500 = vadd.f32 %v1343, %v1499
        %v1501 = vpop.f32.mrb[0].mxu0
        %v1502 = vpop.f32.mrb[0].mxu0
        %v1503 = vadd.f32 %v1343, %v1502
        %v1504 = vpop.f32.mrb[0].mxu0
        %1505 = vmatprep.mubr.bf16.mxu0 0
        %1506 = vmatmul.mubr.bf16.gmra.mrb[0].mxu0 %v1316
        %v1507 = vpop.f32.mrb[0].mxu0
        %v1508 = vadd.f32 %v1343, %v1507
        %v1509 = vpop.f32.mrb[0].mxu0
        %v1510 = vpop.f32.mrb[0].mxu0
        %v1511 = vadd.f32 %v1343, %v1510
        %v1512 = vpop.f32.mrb[0].mxu0
        %1513 = vmatprep.mubr.bf16.mxu0 0
        %1514 = vmatmul.mubr.bf16.gmra.mrb[0].mxu0 %v1317
        %v1515 = vpop.f32.mrb[0].mxu0
        %v1516 = vadd.f32 %v1343, %v1515
        %v1517 = vpop.f32.mrb[0].mxu0
        %v1518 = vpop.f32.mrb[0].mxu0
        %v1519 = vadd.f32 %v1343, %v1518
        %v1520 = vpop.f32.mrb[0].mxu0
        %1521 = vmatprep.mubr.bf16.mxu0 0
        %1522 = vmatmul.mubr.bf16.gmra.mrb[0].mxu0 %v1318
        %v1523 = vpop.f32.mrb[0].mxu0
        %v1524 = vadd.f32 %v1343, %v1523
        %v1525 = vpop.f32.mrb[0].mxu0
        %v1526 = vpop.f32.mrb[0].mxu0
        %v1527 = vadd.f32 %v1343, %v1526
        %v1528 = vpop.f32.mrb[0].mxu0
        %1529 = vmatprep.mubr.bf16.mxu0 0
        %1530 = vmatmul.mubr.bf16.gmra.mrb[0].mxu0 %v1319
        %v1531 = vpop.f32.mrb[0].mxu0
        %v1532 = vadd.f32 %v1343, %v1531
        %v1533 = vpop.f32.mrb[0].mxu0
        %v1534 = vpop.f32.mrb[0].mxu0
        %v1535 = vadd.f32 %v1343, %v1534
        %v1536 = vpop.f32.mrb[0].mxu0
        %1537 = vmatprep.mubr.bf16.mxu0 0
        %1538 = vmatmul.mubr.bf16.gmra.mrb[0].mxu0 %v1320
        %v1539 = vpop.f32.mrb[0].mxu0
        %v1540 = vadd.f32 %v1343, %v1539
        %v1541 = vpop.f32.mrb[0].mxu0
        %v1542 = vpop.f32.mrb[0].mxu0
        %v1543 = vadd.f32 %v1343, %v1542
        %v1544 = vpop.f32.mrb[0].mxu0
        %1545 = vmatprep.mubr.bf16.mxu0 0
        %1546 = vmatmul.mubr.bf16.gmra.mrb[0].mxu0 %v1321
        %v1547 = vpop.f32.mrb[0].mxu0
        %v1548 = vadd.f32 %v1343, %v1547
        %v1549 = vpop.f32.mrb[0].mxu0
        %v1550 = vpop.f32.mrb[0].mxu0
        %v1551 = vadd.f32 %v1343, %v1550
        %v1552 = vpop.f32.mrb[0].mxu0
        %1553 = vdwg.mxu0
        %v1554 = vmax.f32 %v1428, 0.0
        %v1555 = vmax.f32 %v1431, 0.0
        %v1556 = vmax.f32 %v1436, 0.0
        %v1557 = vmax.f32 %v1439, 0.0
        %v1558 = vmax.f32 %v1444, 0.0
        %v1559 = vmax.f32 %v1447, 0.0
        %v1560 = vmax.f32 %v1452, 0.0
        %v1561 = vmax.f32 %v1455, 0.0
        %v1562 = vmax.f32 %v1460, 0.0
        %v1563 = vmax.f32 %v1463, 0.0
        %v1564 = vmax.f32 %v1468, 0.0
        %v1565 = vmax.f32 %v1471, 0.0
        %v1566 = vmax.f32 %v1476, 0.0
        %v1567 = vmax.f32 %v1479, 0.0
        %v1568 = vmax.f32 %v1484, 0.0
        %v1569 = vmax.f32 %v1487, 0.0
        %v1570 = vmax.f32 %v1492, 0.0
        %v1571 = vmax.f32 %v1495, 0.0
        %v1572 = vmax.f32 %v1500, 0.0
        %v1573 = vmax.f32 %v1503, 0.0
        %v1574 = vmax.f32 %v1508, 0.0
        %v1575 = vmax.f32 %v1511, 0.0
        %v1576 = vmax.f32 %v1516, 0.0
        %v1577 = vmax.f32 %v1519, 0.0
        %v1578 = vmax.f32 %v1524, 0.0
        %v1579 = vmax.f32 %v1527, 0.0
        %v1580 = vmax.f32 %v1532, 0.0
        %v1581 = vmax.f32 %v1535, 0.0
        %v1582 = vmax.f32 %v1540, 0.0
        %v1583 = vmax.f32 %v1543, 0.0
        %v1584 = vmax.f32 %v1548, 0.0
        %v1585 = vmax.f32 %v1551, 0.0
        %v1586 = vpack.c.bf16 %v1555, %v1554
        %v1587 = vpack.c.bf16 %v1557, %v1556
        %v1588 = vpack.c.bf16 %v1559, %v1558
        %v1589 = vpack.c.bf16 %v1561, %v1560
        %v1590 = vpack.c.bf16 %v1563, %v1562
        %v1591 = vpack.c.bf16 %v1565, %v1564
        %v1592 = vpack.c.bf16 %v1567, %v1566
        %v1593 = vpack.c.bf16 %v1569, %v1568
        %v1594 = vpack.c.bf16 %v1571, %v1570
        %v1595 = vpack.c.bf16 %v1573, %v1572
        %v1596 = vpack.c.bf16 %v1575, %v1574
        %v1597 = vpack.c.bf16 %v1577, %v1576
        %v1598 = vpack.c.bf16 %v1579, %v1578
        %v1599 = vpack.c.bf16 %v1581, %v1580
        %v1600 = vpack.c.bf16 %v1583, %v1582
        %v1601 = vpack.c.bf16 %v1585, %v1584
        %v1604 = vunpack.c.l.b16 %v607
        %v1605 = vunpack.c.h.b16 %v607
        %v1606 = vunpack.c.l.b16 %v608
        %v1607 = vunpack.c.h.b16 %v608
        %v1608 = vpack.c.b16 %v1606, %v1604
        %v1609 = vpack.c.b16 %v1607, %v1605
        %1612 = vmatprep.subr.bf16.mxu0 0
        %1613 = vmatpush1.bf16.msra.mxu0 %v1586
        %1614 = vmatprep.subr.bf16.mxu0 0
        %1615 = vmatpush1.bf16.msra.mxu0 %v1587
        %1616 = vmatprep.subr.bf16.mxu0 0
        %1617 = vmatpush1.bf16.msra.mxu0 %v1588
        %1618 = vmatprep.subr.bf16.mxu0 0
        %1619 = vmatpush1.bf16.msra.mxu0 %v1589
        %1620 = vmatprep.subr.bf16.mxu0 0
        %1621 = vmatpush1.bf16.msra.mxu0 %v1590
        %1622 = vmatprep.subr.bf16.mxu0 0
        %1623 = vmatpush1.bf16.msra.mxu0 %v1591
        %1624 = vmatprep.subr.bf16.mxu0 0
        %1625 = vmatpush1.bf16.msra.mxu0 %v1592
        %1626 = vmatprep.subr.bf16.mxu0 0
        %1627 = vmatpush1.bf16.msra.mxu0 %v1593
        %1628 = vmatprep.subr.bf16.mxu0 0
        %1629 = vmatpush1.bf16.msra.mxu0 %v1594
        %1630 = vmatprep.subr.bf16.mxu0 0
        %1631 = vmatpush1.bf16.msra.mxu0 %v1595
        %1632 = vmatprep.subr.bf16.mxu0 0
        %1633 = vmatpush1.bf16.msra.mxu0 %v1596
        %1634 = vmatprep.subr.bf16.mxu0 0
        %1635 = vmatpush1.bf16.msra.mxu0 %v1597
        %1636 = vmatprep.subr.bf16.mxu0 0
        %1637 = vmatpush1.bf16.msra.mxu0 %v1598
        %1638 = vmatprep.subr.bf16.mxu0 0
        %1639 = vmatpush1.bf16.msra.mxu0 %v1599
        %1640 = vmatprep.subr.bf16.mxu0 0
        %1641 = vmatpush1.bf16.msra.mxu0 %v1600
        %1642 = vmatprep.subr.bf16.mxu0 0
        %1643 = vmatpush1.bf16.msra.mxu0 %v1601
        %1644 = vmatprep.mubr.bf16.mxu0 %v1609
        %1645 = vmatmul.mubr.bf16.gmra.mrb[0].mxu0 %v1608
        %v1646 = vpop.f32.mrb[0].mxu0
        %v1647 = vadd.f32 0.0, %v1646
        %v1648 = vpop.f32.mrb[0].mxu0
        %v1649 = vpop.f32.mrb[0].mxu0
        %v1650 = vadd.f32 0.0, %v1649
        %v1651 = vpop.f32.mrb[0].mxu0
        %1652 = vdwg.mxu0
        %v1653 = vpack.c.bf16 %v1650, %v1647
        %v1654 = vld [vmem:[#allocation11] sm:$0xf]
        %v1655 = vld [vmem:[#allocation11 + $0x4] sm:$0xf]
        %v1656 = vld [vmem:[#allocation11 + $0x8] sm:$0xf]
        %v1657 = vld [vmem:[#allocation11 + $0xc] sm:$0xf]
        %v1658 = vld [vmem:[#allocation11 + $0x10] sm:$0xf]
        %v1659 = vld [vmem:[#allocation11 + $0x14] sm:$0xf]
        %v1660 = vld [vmem:[#allocation11 + $0x18] sm:$0xf]
        %v1661 = vld [vmem:[#allocation11 + $0x1c] sm:$0xf]
        %v1662 = vld [vmem:[#allocation11 + $0x20] sm:$0xf]
        %v1663 = vld [vmem:[#allocation11 + $0x24] sm:$0xf]
        %v1664 = vld [vmem:[#allocation11 + $0x28] sm:$0xf]
        %v1665 = vld [vmem:[#allocation11 + $0x2c] sm:$0xf]
        %v1666 = vld [vmem:[#allocation11 + $0x30] sm:$0xf]
        %v1667 = vld [vmem:[#allocation11 + $0x34] sm:$0xf]
        %v1668 = vld [vmem:[#allocation11 + $0x38] sm:$0xf]
        %v1669 = vld [vmem:[#allocation11 + $0x3c] sm:$0xf]
        %1670 = vmatprep.subr.bf16.mxu0 0
        %1671 = vmatpush1.bf16.msra.mxu0 %v1586
        %1672 = vmatprep.subr.bf16.mxu0 0
        %1673 = vmatpush1.bf16.msra.mxu0 %v1587
        %1674 = vmatprep.subr.bf16.mxu0 0
        %1675 = vmatpush1.bf16.msra.mxu0 %v1588
        %1676 = vmatprep.subr.bf16.mxu0 0
        %1677 = vmatpush1.bf16.msra.mxu0 %v1589
        %1678 = vmatprep.subr.bf16.mxu0 0
        %1679 = vmatpush1.bf16.msra.mxu0 %v1590
        %1680 = vmatprep.subr.bf16.mxu0 0
        %1681 = vmatpush1.bf16.msra.mxu0 %v1591
        %1682 = vmatprep.subr.bf16.mxu0 0
        %1683 = vmatpush1.bf16.msra.mxu0 %v1592
        %1684 = vmatprep.subr.bf16.mxu0 0
        %1685 = vmatpush1.bf16.msra.mxu0 %v1593
        %1686 = vmatprep.subr.bf16.mxu0 0
        %1687 = vmatpush1.bf16.msra.mxu0 %v1594
        %1688 = vmatprep.subr.bf16.mxu0 0
        %1689 = vmatpush1.bf16.msra.mxu0 %v1595
        %1690 = vmatprep.subr.bf16.mxu0 0
        %1691 = vmatpush1.bf16.msra.mxu0 %v1596
        %1692 = vmatprep.subr.bf16.mxu0 0
        %1693 = vmatpush1.bf16.msra.mxu0 %v1597
        %1694 = vmatprep.subr.bf16.mxu0 0
        %1695 = vmatpush1.bf16.msra.mxu0 %v1598
        %1696 = vmatprep.subr.bf16.mxu0 0
        %1697 = vmatpush1.bf16.msra.mxu0 %v1599
        %1698 = vmatprep.subr.bf16.mxu0 0
        %1699 = vmatpush1.bf16.msra.mxu0 %v1600
        %1700 = vmatprep.subr.bf16.mxu0 0
        %1701 = vmatpush1.bf16.msra.mxu0 %v1601
        %1702 = vmatprep.mubr.bf16.mxu0 %v706
        %1703 = vmatmul.mubr.bf16.gmra.mrb[0].mxu0 %v705
        %v1704 = vpop.f32.mrb[0].mxu0
        %v1705 = vadd.f32 0.0, %v1704
        %v1706 = vpop.f32.mrb[0].mxu0
        %v1707 = vpop.f32.mrb[0].mxu0
        %v1708 = vadd.f32 0.0, %v1707
        %v1709 = vpop.f32.mrb[0].mxu0
        %1710 = vmatprep.mubr.bf16.mxu0 %v708
        %1711 = vmatmul.mubr.bf16.gmra.mrb[0].mxu0 %v707
        %v1712 = vpop.f32.mrb[0].mxu0
        %v1713 = vadd.f32 0.0, %v1712
        %v1714 = vpop.f32.mrb[0].mxu0
        %v1715 = vpop.f32.mrb[0].mxu0
        %v1716 = vadd.f32 0.0, %v1715
        %v1717 = vpop.f32.mrb[0].mxu0
        %1718 = vmatprep.mubr.bf16.mxu0 %v710
        %1719 = vmatmul.mubr.bf16.gmra.mrb[0].mxu0 %v709
        %v1720 = vpop.f32.mrb[0].mxu0
        %v1721 = vadd.f32 0.0, %v1720
        %v1722 = vpop.f32.mrb[0].mxu0
        %v1723 = vpop.f32.mrb[0].mxu0
        %v1724 = vadd.f32 0.0, %v1723
        %v1725 = vpop.f32.mrb[0].mxu0
        %1726 = vmatprep.mubr.bf16.mxu0 %v712
        %1727 = vmatmul.mubr.bf16.gmra.mrb[0].mxu0 %v711
        %v1728 = vpop.f32.mrb[0].mxu0
        %v1729 = vadd.f32 0.0, %v1728
        %v1730 = vpop.f32.mrb[0].mxu0
        %v1731 = vpop.f32.mrb[0].mxu0
        %v1732 = vadd.f32 0.0, %v1731
        %v1733 = vpop.f32.mrb[0].mxu0
        %1734 = vmatprep.mubr.bf16.mxu0 %v714
        %1735 = vmatmul.mubr.bf16.gmra.mrb[0].mxu0 %v713
        %v1736 = vpop.f32.mrb[0].mxu0
        %v1737 = vadd.f32 0.0, %v1736
        %v1738 = vpop.f32.mrb[0].mxu0
        %v1739 = vpop.f32.mrb[0].mxu0
        %v1740 = vadd.f32 0.0, %v1739
        %v1741 = vpop.f32.mrb[0].mxu0
        %1742 = vmatprep.mubr.bf16.mxu0 %v716
        %1743 = vmatmul.mubr.bf16.gmra.mrb[0].mxu0 %v715
        %v1744 = vpop.f32.mrb[0].mxu0
        %v1745 = vadd.f32 0.0, %v1744
        %v1746 = vpop.f32.mrb[0].mxu0
        %v1747 = vpop.f32.mrb[0].mxu0
        %v1748 = vadd.f32 0.0, %v1747
        %v1749 = vpop.f32.mrb[0].mxu0
        %1750 = vmatprep.mubr.bf16.mxu0 %v718
        %1751 = vmatmul.mubr.bf16.gmra.mrb[0].mxu0 %v717
        %v1752 = vpop.f32.mrb[0].mxu0
        %v1753 = vadd.f32 0.0, %v1752
        %v1754 = vpop.f32.mrb[0].mxu0
        %v1755 = vpop.f32.mrb[0].mxu0
        %v1756 = vadd.f32 0.0, %v1755
        %v1757 = vpop.f32.mrb[0].mxu0
        %1758 = vmatprep.mubr.bf16.mxu0 %v720
        %1759 = vmatmul.mubr.bf16.gmra.mrb[0].mxu0 %v719
        %v1760 = vpop.f32.mrb[0].mxu0
        %v1761 = vadd.f32 0.0, %v1760
        %v1762 = vpop.f32.mrb[0].mxu0
        %v1763 = vpop.f32.mrb[0].mxu0
        %v1764 = vadd.f32 0.0, %v1763
        %v1765 = vpop.f32.mrb[0].mxu0
        %1766 = vmatprep.mubr.bf16.mxu0 %v722
        %1767 = vmatmul.mubr.bf16.gmra.mrb[0].mxu0 %v721
        %v1768 = vpop.f32.mrb[0].mxu0
        %v1769 = vadd.f32 0.0, %v1768
        %v1770 = vpop.f32.mrb[0].mxu0
        %v1771 = vpop.f32.mrb[0].mxu0
        %v1772 = vadd.f32 0.0, %v1771
        %v1773 = vpop.f32.mrb[0].mxu0
        %1774 = vmatprep.mubr.bf16.mxu0 %v724
        %1775 = vmatmul.mubr.bf16.gmra.mrb[0].mxu0 %v723
        %v1776 = vpop.f32.mrb[0].mxu0
        %v1777 = vadd.f32 0.0, %v1776
        %v1778 = vpop.f32.mrb[0].mxu0
        %v1779 = vpop.f32.mrb[0].mxu0
        %v1780 = vadd.f32 0.0, %v1779
        %v1781 = vpop.f32.mrb[0].mxu0
        %1782 = vmatprep.mubr.bf16.mxu0 %v726
        %1783 = vmatmul.mubr.bf16.gmra.mrb[0].mxu0 %v725
        %v1784 = vpop.f32.mrb[0].mxu0
        %v1785 = vadd.f32 0.0, %v1784
        %v1786 = vpop.f32.mrb[0].mxu0
        %v1787 = vpop.f32.mrb[0].mxu0
        %v1788 = vadd.f32 0.0, %v1787
        %v1789 = vpop.f32.mrb[0].mxu0
        %1790 = vmatprep.mubr.bf16.mxu0 %v728
        %1791 = vmatmul.mubr.bf16.gmra.mrb[0].mxu0 %v727
        %v1792 = vpop.f32.mrb[0].mxu0
        %v1793 = vadd.f32 0.0, %v1792
        %v1794 = vpop.f32.mrb[0].mxu0
        %v1795 = vpop.f32.mrb[0].mxu0
        %v1796 = vadd.f32 0.0, %v1795
        %v1797 = vpop.f32.mrb[0].mxu0
        %1798 = vmatprep.mubr.bf16.mxu0 %v730
        %1799 = vmatmul.mubr.bf16.gmra.mrb[0].mxu0 %v729
        %v1800 = vpop.f32.mrb[0].mxu0
        %v1801 = vadd.f32 0.0, %v1800
        %v1802 = vpop.f32.mrb[0].mxu0
        %v1803 = vpop.f32.mrb[0].mxu0
        %v1804 = vadd.f32 0.0, %v1803
        %v1805 = vpop.f32.mrb[0].mxu0
        %1806 = vmatprep.mubr.bf16.mxu0 %v732
        %1807 = vmatmul.mubr.bf16.gmra.mrb[0].mxu0 %v731
        %v1808 = vpop.f32.mrb[0].mxu0
        %v1809 = vadd.f32 0.0, %v1808
        %v1810 = vpop.f32.mrb[0].mxu0
        %v1811 = vpop.f32.mrb[0].mxu0
        %v1812 = vadd.f32 0.0, %v1811
        %v1813 = vpop.f32.mrb[0].mxu0
        %1814 = vmatprep.mubr.bf16.mxu0 %v734
        %1815 = vmatmul.mubr.bf16.gmra.mrb[0].mxu0 %v733
        %v1816 = vpop.f32.mrb[0].mxu0
        %v1817 = vadd.f32 0.0, %v1816
        %v1818 = vpop.f32.mrb[0].mxu0
        %v1819 = vpop.f32.mrb[0].mxu0
        %v1820 = vadd.f32 0.0, %v1819
        %v1821 = vpop.f32.mrb[0].mxu0
        %1822 = vmatprep.mubr.bf16.mxu0 %v736
        %1823 = vmatmul.mubr.bf16.gmra.mrb[0].mxu0 %v735
        %v1824 = vpop.f32.mrb[0].mxu0
        %v1825 = vadd.f32 0.0, %v1824
        %v1826 = vpop.f32.mrb[0].mxu0
        %v1827 = vpop.f32.mrb[0].mxu0
        %v1828 = vadd.f32 0.0, %v1827
        %v1829 = vpop.f32.mrb[0].mxu0
        %1830 = vdwg.mxu0
        %v1831 = vpack.c.bf16 %v1708, %v1705
        %v1832 = vpack.c.bf16 %v1716, %v1713
        %v1833 = vpack.c.bf16 %v1724, %v1721
        %v1834 = vpack.c.bf16 %v1732, %v1729
        %v1835 = vpack.c.bf16 %v1740, %v1737
        %v1836 = vpack.c.bf16 %v1748, %v1745
        %v1837 = vpack.c.bf16 %v1756, %v1753
        %v1838 = vpack.c.bf16 %v1764, %v1761
        %v1839 = vpack.c.bf16 %v1772, %v1769
        %v1840 = vpack.c.bf16 %v1780, %v1777
        %v1841 = vpack.c.bf16 %v1788, %v1785
        %v1842 = vpack.c.bf16 %v1796, %v1793
        %v1843 = vpack.c.bf16 %v1804, %v1801
        %v1844 = vpack.c.bf16 %v1812, %v1809
        %v1845 = vpack.c.bf16 %v1820, %v1817
        %v1846 = vpack.c.bf16 %v1828, %v1825
        %s1847 = scalar_lea.vmem [#allocation8], 64
        %v1848 = vld [vmem:[%s1847] sm:$0xf]
        %v1849 = vld [vmem:[%s1847 + $0x4] sm:$0xf]
        %v1850 = vld [vmem:[%s1847 + $0x8] sm:$0xf]
        %v1851 = vld [vmem:[%s1847 + $0xc] sm:$0xf]
        %v1852 = vld [vmem:[%s1847 + $0x10] sm:$0xf]
        %v1853 = vld [vmem:[%s1847 + $0x14] sm:$0xf]
        %v1854 = vld [vmem:[%s1847 + $0x18] sm:$0xf]
        %v1855 = vld [vmem:[%s1847 + $0x1c] sm:$0xf]
        %v1856 = vld [vmem:[%s1847 + $0x20] sm:$0xf]
        %v1857 = vld [vmem:[%s1847 + $0x24] sm:$0xf]
        %v1858 = vld [vmem:[%s1847 + $0x28] sm:$0xf]
        %v1859 = vld [vmem:[%s1847 + $0x2c] sm:$0xf]
        %v1860 = vld [vmem:[%s1847 + $0x30] sm:$0xf]
        %v1861 = vld [vmem:[%s1847 + $0x34] sm:$0xf]
        %v1862 = vld [vmem:[%s1847 + $0x38] sm:$0xf]
        %v1863 = vld [vmem:[%s1847 + $0x3c] sm:$0xf]
        %s1864 = scalar_lea.vmem %s4, 1
        %v1865 = vld [vmem:[%s1864] sm:$0x1]
        %v1867 = vlaneseq
        %v1868 = vshrl.u32 %v1867, 7
        %v1869 = vsub.s32 0, %v1868
        %v1870 = vrot.slane %v1865, %v1869
        %v1888 = vunpack.c.l.b16 %v1848
        %v1889 = vunpack.c.l.b16 %v1849
        %v1890 = vunpack.c.l.b16 %v1850
        %v1891 = vunpack.c.l.b16 %v1851
        %v1892 = vunpack.c.l.b16 %v1852
        %v1893 = vunpack.c.l.b16 %v1853
        %v1894 = vunpack.c.l.b16 %v1854
        %v1895 = vunpack.c.l.b16 %v1855
        %v1896 = vunpack.c.l.b16 %v1856
        %v1897 = vunpack.c.l.b16 %v1857
        %v1898 = vunpack.c.l.b16 %v1858
        %v1899 = vunpack.c.l.b16 %v1859
        %v1900 = vunpack.c.l.b16 %v1860
        %v1901 = vunpack.c.l.b16 %v1861
        %v1902 = vunpack.c.l.b16 %v1862
        %v1903 = vunpack.c.l.b16 %v1863
        %v1904 = vpack.c.b16 %v1889, %v1888
        %v1905 = vpack.c.b16 %v1891, %v1890
        %v1906 = vpack.c.b16 %v1893, %v1892
        %v1907 = vpack.c.b16 %v1895, %v1894
        %v1908 = vpack.c.b16 %v1897, %v1896
        %v1909 = vpack.c.b16 %v1899, %v1898
        %v1910 = vpack.c.b16 %v1901, %v1900
        %v1911 = vpack.c.b16 %v1903, %v1902
        %1920 = vmatprep.subr.bf16.mxu0 0
        %1921 = vmatpush1.bf16.msra.mxu0 %v1904
        %1922 = vmatprep.subr.bf16.mxu0 0
        %1923 = vmatpush1.bf16.msra.mxu0 %v1905
        %1924 = vmatprep.subr.bf16.mxu0 0
        %1925 = vmatpush1.bf16.msra.mxu0 %v1906
        %1926 = vmatprep.subr.bf16.mxu0 0
        %1927 = vmatpush1.bf16.msra.mxu0 %v1907
        %1928 = vmatprep.subr.bf16.mxu0 0
        %1929 = vmatpush1.bf16.msra.mxu0 %v1908
        %1930 = vmatprep.subr.bf16.mxu0 0
        %1931 = vmatpush1.bf16.msra.mxu0 %v1909
        %1932 = vmatprep.subr.bf16.mxu0 0
        %1933 = vmatpush1.bf16.msra.mxu0 %v1910
        %1934 = vmatprep.subr.bf16.mxu0 0
        %1935 = vmatpush1.bf16.msra.mxu0 %v1911
        %1936 = vmatprep.subr.bf16.mxu0 0
        %1937 = vmatpush1.bf16.msra.mxu0 0
        %1938 = vmatprep.subr.bf16.mxu0 0
        %1939 = vmatpush1.bf16.msra.mxu0 0
        %1940 = vmatprep.subr.bf16.mxu0 0
        %1941 = vmatpush1.bf16.msra.mxu0 0
        %1942 = vmatprep.subr.bf16.mxu0 0
        %1943 = vmatpush1.bf16.msra.mxu0 0
        %1944 = vmatprep.subr.bf16.mxu0 0
        %1945 = vmatpush1.bf16.msra.mxu0 0
        %1946 = vmatprep.subr.bf16.mxu0 0
        %1947 = vmatpush1.bf16.msra.mxu0 0
        %1948 = vmatprep.subr.bf16.mxu0 0
        %1949 = vmatpush1.bf16.msra.mxu0 0
        %1950 = vmatprep.subr.bf16.mxu0 0
        %1951 = vmatpush1.bf16.msra.mxu0 0
        %1952 = vmatprep.mubr.bf16.mxu0 0
        %1953 = vmatmul.mubr.bf16.gmra.mrb[0].mxu0 %v1831
        %v1954 = vpop.f32.mrb[0].mxu0
        %v1955 = vadd.f32 %v1870, %v1954
        %v1956 = vpop.f32.mrb[0].mxu0
        %v1957 = vpop.f32.mrb[0].mxu0
        %v1958 = vadd.f32 %v1870, %v1957
        %v1959 = vpop.f32.mrb[0].mxu0
        %1960 = vmatprep.mubr.bf16.mxu0 0
        %1961 = vmatmul.mubr.bf16.gmra.mrb[0].mxu0 %v1832
        %v1962 = vpop.f32.mrb[0].mxu0
        %v1963 = vadd.f32 %v1870, %v1962
        %v1964 = vpop.f32.mrb[0].mxu0
        %v1965 = vpop.f32.mrb[0].mxu0
        %v1966 = vadd.f32 %v1870, %v1965
        %v1967 = vpop.f32.mrb[0].mxu0
        %1968 = vmatprep.mubr.bf16.mxu0 0
        %1969 = vmatmul.mubr.bf16.gmra.mrb[0].mxu0 %v1833
        %v1970 = vpop.f32.mrb[0].mxu0
        %v1971 = vadd.f32 %v1870, %v1970
        %v1972 = vpop.f32.mrb[0].mxu0
        %v1973 = vpop.f32.mrb[0].mxu0
        %v1974 = vadd.f32 %v1870, %v1973
        %v1975 = vpop.f32.mrb[0].mxu0
        %1976 = vmatprep.mubr.bf16.mxu0 0
        %1977 = vmatmul.mubr.bf16.gmra.mrb[0].mxu0 %v1834
        %v1978 = vpop.f32.mrb[0].mxu0
        %v1979 = vadd.f32 %v1870, %v1978
        %v1980 = vpop.f32.mrb[0].mxu0
        %v1981 = vpop.f32.mrb[0].mxu0
        %v1982 = vadd.f32 %v1870, %v1981
        %v1983 = vpop.f32.mrb[0].mxu0
        %1984 = vmatprep.mubr.bf16.mxu0 0
        %1985 = vmatmul.mubr.bf16.gmra.mrb[0].mxu0 %v1835
        %v1986 = vpop.f32.mrb[0].mxu0
        %v1987 = vadd.f32 %v1870, %v1986
        %v1988 = vpop.f32.mrb[0].mxu0
        %v1989 = vpop.f32.mrb[0].mxu0
        %v1990 = vadd.f32 %v1870, %v1989
        %v1991 = vpop.f32.mrb[0].mxu0
        %1992 = vmatprep.mubr.bf16.mxu0 0
        %1993 = vmatmul.mubr.bf16.gmra.mrb[0].mxu0 %v1836
        %v1994 = vpop.f32.mrb[0].mxu0
        %v1995 = vadd.f32 %v1870, %v1994
        %v1996 = vpop.f32.mrb[0].mxu0
        %v1997 = vpop.f32.mrb[0].mxu0
        %v1998 = vadd.f32 %v1870, %v1997
        %v1999 = vpop.f32.mrb[0].mxu0
        %2000 = vmatprep.mubr.bf16.mxu0 0
        %2001 = vmatmul.mubr.bf16.gmra.mrb[0].mxu0 %v1837
        %v2002 = vpop.f32.mrb[0].mxu0
        %v2003 = vadd.f32 %v1870, %v2002
        %v2004 = vpop.f32.mrb[0].mxu0
        %v2005 = vpop.f32.mrb[0].mxu0
        %v2006 = vadd.f32 %v1870, %v2005
        %v2007 = vpop.f32.mrb[0].mxu0
        %2008 = vmatprep.mubr.bf16.mxu0 0
        %2009 = vmatmul.mubr.bf16.gmra.mrb[0].mxu0 %v1838
        %v2010 = vpop.f32.mrb[0].mxu0
        %v2011 = vadd.f32 %v1870, %v2010
        %v2012 = vpop.f32.mrb[0].mxu0
        %v2013 = vpop.f32.mrb[0].mxu0
        %v2014 = vadd.f32 %v1870, %v2013
        %v2015 = vpop.f32.mrb[0].mxu0
        %2016 = vmatprep.mubr.bf16.mxu0 0
        %2017 = vmatmul.mubr.bf16.gmra.mrb[0].mxu0 %v1839
        %v2018 = vpop.f32.mrb[0].mxu0
        %v2019 = vadd.f32 %v1870, %v2018
        %v2020 = vpop.f32.mrb[0].mxu0
        %v2021 = vpop.f32.mrb[0].mxu0
        %v2022 = vadd.f32 %v1870, %v2021
        %v2023 = vpop.f32.mrb[0].mxu0
        %2024 = vmatprep.mubr.bf16.mxu0 0
        %2025 = vmatmul.mubr.bf16.gmra.mrb[0].mxu0 %v1840
        %v2026 = vpop.f32.mrb[0].mxu0
        %v2027 = vadd.f32 %v1870, %v2026
        %v2028 = vpop.f32.mrb[0].mxu0
        %v2029 = vpop.f32.mrb[0].mxu0
        %v2030 = vadd.f32 %v1870, %v2029
        %v2031 = vpop.f32.mrb[0].mxu0
        %2032 = vmatprep.mubr.bf16.mxu0 0
        %2033 = vmatmul.mubr.bf16.gmra.mrb[0].mxu0 %v1841
        %v2034 = vpop.f32.mrb[0].mxu0
        %v2035 = vadd.f32 %v1870, %v2034
        %v2036 = vpop.f32.mrb[0].mxu0
        %v2037 = vpop.f32.mrb[0].mxu0
        %v2038 = vadd.f32 %v1870, %v2037
        %v2039 = vpop.f32.mrb[0].mxu0
        %2040 = vmatprep.mubr.bf16.mxu0 0
        %2041 = vmatmul.mubr.bf16.gmra.mrb[0].mxu0 %v1842
        %v2042 = vpop.f32.mrb[0].mxu0
        %v2043 = vadd.f32 %v1870, %v2042
        %v2044 = vpop.f32.mrb[0].mxu0
        %v2045 = vpop.f32.mrb[0].mxu0
        %v2046 = vadd.f32 %v1870, %v2045
        %v2047 = vpop.f32.mrb[0].mxu0
        %2048 = vmatprep.mubr.bf16.mxu0 0
        %2049 = vmatmul.mubr.bf16.gmra.mrb[0].mxu0 %v1843
        %v2050 = vpop.f32.mrb[0].mxu0
        %v2051 = vadd.f32 %v1870, %v2050
        %v2052 = vpop.f32.mrb[0].mxu0
        %v2053 = vpop.f32.mrb[0].mxu0
        %v2054 = vadd.f32 %v1870, %v2053
        %v2055 = vpop.f32.mrb[0].mxu0
        %2056 = vmatprep.mubr.bf16.mxu0 0
        %2057 = vmatmul.mubr.bf16.gmra.mrb[0].mxu0 %v1844
        %v2058 = vpop.f32.mrb[0].mxu0
        %v2059 = vadd.f32 %v1870, %v2058
        %v2060 = vpop.f32.mrb[0].mxu0
        %v2061 = vpop.f32.mrb[0].mxu0
        %v2062 = vadd.f32 %v1870, %v2061
        %v2063 = vpop.f32.mrb[0].mxu0
        %2064 = vmatprep.mubr.bf16.mxu0 0
        %2065 = vmatmul.mubr.bf16.gmra.mrb[0].mxu0 %v1845
        %v2066 = vpop.f32.mrb[0].mxu0
        %v2067 = vadd.f32 %v1870, %v2066
        %v2068 = vpop.f32.mrb[0].mxu0
        %v2069 = vpop.f32.mrb[0].mxu0
        %v2070 = vadd.f32 %v1870, %v2069
        %v2071 = vpop.f32.mrb[0].mxu0
        %2072 = vmatprep.mubr.bf16.mxu0 0
        %2073 = vmatmul.mubr.bf16.gmra.mrb[0].mxu0 %v1846
        %v2074 = vpop.f32.mrb[0].mxu0
        %v2075 = vadd.f32 %v1870, %v2074
        %v2076 = vpop.f32.mrb[0].mxu0
        %v2077 = vpop.f32.mrb[0].mxu0
        %v2078 = vadd.f32 %v1870, %v2077
        %v2079 = vpop.f32.mrb[0].mxu0
        %2080 = vdwg.mxu0
        %v2081 = vmax.f32 %v1955, 0.0
        %v2082 = vmax.f32 %v1958, 0.0
        %v2083 = vmax.f32 %v1963, 0.0
        %v2084 = vmax.f32 %v1966, 0.0
        %v2085 = vmax.f32 %v1971, 0.0
        %v2086 = vmax.f32 %v1974, 0.0
        %v2087 = vmax.f32 %v1979, 0.0
        %v2088 = vmax.f32 %v1982, 0.0
        %v2089 = vmax.f32 %v1987, 0.0
        %v2090 = vmax.f32 %v1990, 0.0
        %v2091 = vmax.f32 %v1995, 0.0
        %v2092 = vmax.f32 %v1998, 0.0
        %v2093 = vmax.f32 %v2003, 0.0
        %v2094 = vmax.f32 %v2006, 0.0
        %v2095 = vmax.f32 %v2011, 0.0
        %v2096 = vmax.f32 %v2014, 0.0
        %v2097 = vmax.f32 %v2019, 0.0
        %v2098 = vmax.f32 %v2022, 0.0
        %v2099 = vmax.f32 %v2027, 0.0
        %v2100 = vmax.f32 %v2030, 0.0
        %v2101 = vmax.f32 %v2035, 0.0
        %v2102 = vmax.f32 %v2038, 0.0
        %v2103 = vmax.f32 %v2043, 0.0
        %v2104 = vmax.f32 %v2046, 0.0
        %v2105 = vmax.f32 %v2051, 0.0
        %v2106 = vmax.f32 %v2054, 0.0
        %v2107 = vmax.f32 %v2059, 0.0
        %v2108 = vmax.f32 %v2062, 0.0
        %v2109 = vmax.f32 %v2067, 0.0
        %v2110 = vmax.f32 %v2070, 0.0
        %v2111 = vmax.f32 %v2075, 0.0
        %v2112 = vmax.f32 %v2078, 0.0
        %v2113 = vpack.c.bf16 %v2082, %v2081
        %v2114 = vpack.c.bf16 %v2084, %v2083
        %v2115 = vpack.c.bf16 %v2086, %v2085
        %v2116 = vpack.c.bf16 %v2088, %v2087
        %v2117 = vpack.c.bf16 %v2090, %v2089
        %v2118 = vpack.c.bf16 %v2092, %v2091
        %v2119 = vpack.c.bf16 %v2094, %v2093
        %v2120 = vpack.c.bf16 %v2096, %v2095
        %v2121 = vpack.c.bf16 %v2098, %v2097
        %v2122 = vpack.c.bf16 %v2100, %v2099
        %v2123 = vpack.c.bf16 %v2102, %v2101
        %v2124 = vpack.c.bf16 %v2104, %v2103
        %v2125 = vpack.c.bf16 %v2106, %v2105
        %v2126 = vpack.c.bf16 %v2108, %v2107
        %v2127 = vpack.c.bf16 %v2110, %v2109
        %v2128 = vpack.c.bf16 %v2112, %v2111
        %s2129 = scalar_lea.vmem [#allocation10], 64
        %v2130 = vld [vmem:[%s2129] sm:$0xf]
        %v2131 = vld [vmem:[%s2129 + $0x4] sm:$0xf]
        %v2132 = vld [vmem:[%s2129 + $0x8] sm:$0xf]
        %v2133 = vld [vmem:[%s2129 + $0xc] sm:$0xf]
        %v2134 = vld [vmem:[%s2129 + $0x10] sm:$0xf]
        %v2135 = vld [vmem:[%s2129 + $0x14] sm:$0xf]
        %v2136 = vld [vmem:[%s2129 + $0x18] sm:$0xf]
        %v2137 = vld [vmem:[%s2129 + $0x1c] sm:$0xf]
        %v2138 = vld [vmem:[%s2129 + $0x20] sm:$0xf]
        %v2139 = vld [vmem:[%s2129 + $0x24] sm:$0xf]
        %v2140 = vld [vmem:[%s2129 + $0x28] sm:$0xf]
        %v2141 = vld [vmem:[%s2129 + $0x2c] sm:$0xf]
        %v2142 = vld [vmem:[%s2129 + $0x30] sm:$0xf]
        %v2143 = vld [vmem:[%s2129 + $0x34] sm:$0xf]
        %v2144 = vld [vmem:[%s2129 + $0x38] sm:$0xf]
        %v2145 = vld [vmem:[%s2129 + $0x3c] sm:$0xf]
        %s2146 = scalar_lea.vmem %s6, 1
        %v2147 = vld [vmem:[%s2146] sm:$0x1]
        %v2149 = vlaneseq
        %v2150 = vshrl.u32 %v2149, 7
        %v2151 = vsub.s32 0, %v2150
        %v2152 = vrot.slane %v2147, %v2151
        %v2170 = vunpack.c.l.b16 %v2130
        %v2171 = vunpack.c.l.b16 %v2131
        %v2172 = vunpack.c.l.b16 %v2132
        %v2173 = vunpack.c.l.b16 %v2133
        %v2174 = vunpack.c.l.b16 %v2134
        %v2175 = vunpack.c.l.b16 %v2135
        %v2176 = vunpack.c.l.b16 %v2136
        %v2177 = vunpack.c.l.b16 %v2137
        %v2178 = vunpack.c.l.b16 %v2138
        %v2179 = vunpack.c.l.b16 %v2139
        %v2180 = vunpack.c.l.b16 %v2140
        %v2181 = vunpack.c.l.b16 %v2141
        %v2182 = vunpack.c.l.b16 %v2142
        %v2183 = vunpack.c.l.b16 %v2143
        %v2184 = vunpack.c.l.b16 %v2144
        %v2185 = vunpack.c.l.b16 %v2145
        %v2186 = vpack.c.b16 %v2171, %v2170
        %v2187 = vpack.c.b16 %v2173, %v2172
        %v2188 = vpack.c.b16 %v2175, %v2174
        %v2189 = vpack.c.b16 %v2177, %v2176
        %v2190 = vpack.c.b16 %v2179, %v2178
        %v2191 = vpack.c.b16 %v2181, %v2180
        %v2192 = vpack.c.b16 %v2183, %v2182
        %v2193 = vpack.c.b16 %v2185, %v2184
        %2202 = vmatprep.subr.bf16.mxu0 0
        %2203 = vmatpush1.bf16.msra.mxu0 %v2186
        %2204 = vmatprep.subr.bf16.mxu0 0
        %2205 = vmatpush1.bf16.msra.mxu0 %v2187
        %2206 = vmatprep.subr.bf16.mxu0 0
        %2207 = vmatpush1.bf16.msra.mxu0 %v2188
        %2208 = vmatprep.subr.bf16.mxu0 0
        %2209 = vmatpush1.bf16.msra.mxu0 %v2189
        %2210 = vmatprep.subr.bf16.mxu0 0
        %2211 = vmatpush1.bf16.msra.mxu0 %v2190
        %2212 = vmatprep.subr.bf16.mxu0 0
        %2213 = vmatpush1.bf16.msra.mxu0 %v2191
        %2214 = vmatprep.subr.bf16.mxu0 0
        %2215 = vmatpush1.bf16.msra.mxu0 %v2192
        %2216 = vmatprep.subr.bf16.mxu0 0
        %2217 = vmatpush1.bf16.msra.mxu0 %v2193
        %2218 = vmatprep.subr.bf16.mxu0 0
        %2219 = vmatpush1.bf16.msra.mxu0 0
        %2220 = vmatprep.subr.bf16.mxu0 0
        %2221 = vmatpush1.bf16.msra.mxu0 0
        %2222 = vmatprep.subr.bf16.mxu0 0
        %2223 = vmatpush1.bf16.msra.mxu0 0
        %2224 = vmatprep.subr.bf16.mxu0 0
        %2225 = vmatpush1.bf16.msra.mxu0 0
        %2226 = vmatprep.subr.bf16.mxu0 0
        %2227 = vmatpush1.bf16.msra.mxu0 0
        %2228 = vmatprep.subr.bf16.mxu0 0
        %2229 = vmatpush1.bf16.msra.mxu0 0
        %2230 = vmatprep.subr.bf16.mxu0 0
        %2231 = vmatpush1.bf16.msra.mxu0 0
        %2232 = vmatprep.subr.bf16.mxu0 0
        %2233 = vmatpush1.bf16.msra.mxu0 0
        %2234 = vmatprep.mubr.bf16.mxu0 0
        %2235 = vmatmul.mubr.bf16.gmra.mrb[0].mxu0 %v2113
        %v2236 = vpop.f32.mrb[0].mxu0
        %v2237 = vadd.f32 %v2152, %v2236
        %v2238 = vpop.f32.mrb[0].mxu0
        %v2239 = vpop.f32.mrb[0].mxu0
        %v2240 = vadd.f32 %v2152, %v2239
        %v2241 = vpop.f32.mrb[0].mxu0
        %2242 = vmatprep.mubr.bf16.mxu0 0
        %2243 = vmatmul.mubr.bf16.gmra.mrb[0].mxu0 %v2114
        %v2244 = vpop.f32.mrb[0].mxu0
        %v2245 = vadd.f32 %v2152, %v2244
        %v2246 = vpop.f32.mrb[0].mxu0
        %v2247 = vpop.f32.mrb[0].mxu0
        %v2248 = vadd.f32 %v2152, %v2247
        %v2249 = vpop.f32.mrb[0].mxu0
        %2250 = vmatprep.mubr.bf16.mxu0 0
        %2251 = vmatmul.mubr.bf16.gmra.mrb[0].mxu0 %v2115
        %v2252 = vpop.f32.mrb[0].mxu0
        %v2253 = vadd.f32 %v2152, %v2252
        %v2254 = vpop.f32.mrb[0].mxu0
        %v2255 = vpop.f32.mrb[0].mxu0
        %v2256 = vadd.f32 %v2152, %v2255
        %v2257 = vpop.f32.mrb[0].mxu0
        %2258 = vmatprep.mubr.bf16.mxu0 0
        %2259 = vmatmul.mubr.bf16.gmra.mrb[0].mxu0 %v2116
        %v2260 = vpop.f32.mrb[0].mxu0
        %v2261 = vadd.f32 %v2152, %v2260
        %v2262 = vpop.f32.mrb[0].mxu0
        %v2263 = vpop.f32.mrb[0].mxu0
        %v2264 = vadd.f32 %v2152, %v2263
        %v2265 = vpop.f32.mrb[0].mxu0
        %2266 = vmatprep.mubr.bf16.mxu0 0
        %2267 = vmatmul.mubr.bf16.gmra.mrb[0].mxu0 %v2117
        %v2268 = vpop.f32.mrb[0].mxu0
        %v2269 = vadd.f32 %v2152, %v2268
        %v2270 = vpop.f32.mrb[0].mxu0
        %v2271 = vpop.f32.mrb[0].mxu0
        %v2272 = vadd.f32 %v2152, %v2271
        %v2273 = vpop.f32.mrb[0].mxu0
        %2274 = vmatprep.mubr.bf16.mxu0 0
        %2275 = vmatmul.mubr.bf16.gmra.mrb[0].mxu0 %v2118
        %v2276 = vpop.f32.mrb[0].mxu0
        %v2277 = vadd.f32 %v2152, %v2276
        %v2278 = vpop.f32.mrb[0].mxu0
        %v2279 = vpop.f32.mrb[0].mxu0
        %v2280 = vadd.f32 %v2152, %v2279
        %v2281 = vpop.f32.mrb[0].mxu0
        %2282 = vmatprep.mubr.bf16.mxu0 0
        %2283 = vmatmul.mubr.bf16.gmra.mrb[0].mxu0 %v2119
        %v2284 = vpop.f32.mrb[0].mxu0
        %v2285 = vadd.f32 %v2152, %v2284
        %v2286 = vpop.f32.mrb[0].mxu0
        %v2287 = vpop.f32.mrb[0].mxu0
        %v2288 = vadd.f32 %v2152, %v2287
        %v2289 = vpop.f32.mrb[0].mxu0
        %2290 = vmatprep.mubr.bf16.mxu0 0
        %2291 = vmatmul.mubr.bf16.gmra.mrb[0].mxu0 %v2120
        %v2292 = vpop.f32.mrb[0].mxu0
        %v2293 = vadd.f32 %v2152, %v2292
        %v2294 = vpop.f32.mrb[0].mxu0
        %v2295 = vpop.f32.mrb[0].mxu0
        %v2296 = vadd.f32 %v2152, %v2295
        %v2297 = vpop.f32.mrb[0].mxu0
        %2298 = vmatprep.mubr.bf16.mxu0 0
        %2299 = vmatmul.mubr.bf16.gmra.mrb[0].mxu0 %v2121
        %v2300 = vpop.f32.mrb[0].mxu0
        %v2301 = vadd.f32 %v2152, %v2300
        %v2302 = vpop.f32.mrb[0].mxu0
        %v2303 = vpop.f32.mrb[0].mxu0
        %v2304 = vadd.f32 %v2152, %v2303
        %v2305 = vpop.f32.mrb[0].mxu0
        %2306 = vmatprep.mubr.bf16.mxu0 0
        %2307 = vmatmul.mubr.bf16.gmra.mrb[0].mxu0 %v2122
        %v2308 = vpop.f32.mrb[0].mxu0
        %v2309 = vadd.f32 %v2152, %v2308
        %v2310 = vpop.f32.mrb[0].mxu0
        %v2311 = vpop.f32.mrb[0].mxu0
        %v2312 = vadd.f32 %v2152, %v2311
        %v2313 = vpop.f32.mrb[0].mxu0
        %2314 = vmatprep.mubr.bf16.mxu0 0
        %2315 = vmatmul.mubr.bf16.gmra.mrb[0].mxu0 %v2123
        %v2316 = vpop.f32.mrb[0].mxu0
        %v2317 = vadd.f32 %v2152, %v2316
        %v2318 = vpop.f32.mrb[0].mxu0
        %v2319 = vpop.f32.mrb[0].mxu0
        %v2320 = vadd.f32 %v2152, %v2319
        %v2321 = vpop.f32.mrb[0].mxu0
        %2322 = vmatprep.mubr.bf16.mxu0 0
        %2323 = vmatmul.mubr.bf16.gmra.mrb[0].mxu0 %v2124
        %v2324 = vpop.f32.mrb[0].mxu0
        %v2325 = vadd.f32 %v2152, %v2324
        %v2326 = vpop.f32.mrb[0].mxu0
        %v2327 = vpop.f32.mrb[0].mxu0
        %v2328 = vadd.f32 %v2152, %v2327
        %v2329 = vpop.f32.mrb[0].mxu0
        %2330 = vmatprep.mubr.bf16.mxu0 0
        %2331 = vmatmul.mubr.bf16.gmra.mrb[0].mxu0 %v2125
        %v2332 = vpop.f32.mrb[0].mxu0
        %v2333 = vadd.f32 %v2152, %v2332
        %v2334 = vpop.f32.mrb[0].mxu0
        %v2335 = vpop.f32.mrb[0].mxu0
        %v2336 = vadd.f32 %v2152, %v2335
        %v2337 = vpop.f32.mrb[0].mxu0
        %2338 = vmatprep.mubr.bf16.mxu0 0
        %2339 = vmatmul.mubr.bf16.gmra.mrb[0].mxu0 %v2126
        %v2340 = vpop.f32.mrb[0].mxu0
        %v2341 = vadd.f32 %v2152, %v2340
        %v2342 = vpop.f32.mrb[0].mxu0
        %v2343 = vpop.f32.mrb[0].mxu0
        %v2344 = vadd.f32 %v2152, %v2343
        %v2345 = vpop.f32.mrb[0].mxu0
        %2346 = vmatprep.mubr.bf16.mxu0 0
        %2347 = vmatmul.mubr.bf16.gmra.mrb[0].mxu0 %v2127
        %v2348 = vpop.f32.mrb[0].mxu0
        %v2349 = vadd.f32 %v2152, %v2348
        %v2350 = vpop.f32.mrb[0].mxu0
        %v2351 = vpop.f32.mrb[0].mxu0
        %v2352 = vadd.f32 %v2152, %v2351
        %v2353 = vpop.f32.mrb[0].mxu0
        %2354 = vmatprep.mubr.bf16.mxu0 0
        %2355 = vmatmul.mubr.bf16.gmra.mrb[0].mxu0 %v2128
        %v2356 = vpop.f32.mrb[0].mxu0
        %v2357 = vadd.f32 %v2152, %v2356
        %v2358 = vpop.f32.mrb[0].mxu0
        %v2359 = vpop.f32.mrb[0].mxu0
        %v2360 = vadd.f32 %v2152, %v2359
        %v2361 = vpop.f32.mrb[0].mxu0
        %2362 = vdwg.mxu0
        %v2363 = vmax.f32 %v2237, 0.0
        %v2364 = vmax.f32 %v2240, 0.0
        %v2365 = vmax.f32 %v2245, 0.0
        %v2366 = vmax.f32 %v2248, 0.0
        %v2367 = vmax.f32 %v2253, 0.0
        %v2368 = vmax.f32 %v2256, 0.0
        %v2369 = vmax.f32 %v2261, 0.0
        %v2370 = vmax.f32 %v2264, 0.0
        %v2371 = vmax.f32 %v2269, 0.0
        %v2372 = vmax.f32 %v2272, 0.0
        %v2373 = vmax.f32 %v2277, 0.0
        %v2374 = vmax.f32 %v2280, 0.0
        %v2375 = vmax.f32 %v2285, 0.0
        %v2376 = vmax.f32 %v2288, 0.0
        %v2377 = vmax.f32 %v2293, 0.0
        %v2378 = vmax.f32 %v2296, 0.0
        %v2379 = vmax.f32 %v2301, 0.0
        %v2380 = vmax.f32 %v2304, 0.0
        %v2381 = vmax.f32 %v2309, 0.0
        %v2382 = vmax.f32 %v2312, 0.0
        %v2383 = vmax.f32 %v2317, 0.0
        %v2384 = vmax.f32 %v2320, 0.0
        %v2385 = vmax.f32 %v2325, 0.0
        %v2386 = vmax.f32 %v2328, 0.0
        %v2387 = vmax.f32 %v2333, 0.0
        %v2388 = vmax.f32 %v2336, 0.0
        %v2389 = vmax.f32 %v2341, 0.0
        %v2390 = vmax.f32 %v2344, 0.0
        %v2391 = vmax.f32 %v2349, 0.0
        %v2392 = vmax.f32 %v2352, 0.0
        %v2393 = vmax.f32 %v2357, 0.0
        %v2394 = vmax.f32 %v2360, 0.0
        %v2395 = vpack.c.bf16 %v2364, %v2363
        %v2396 = vpack.c.bf16 %v2366, %v2365
        %v2397 = vpack.c.bf16 %v2368, %v2367
        %v2398 = vpack.c.bf16 %v2370, %v2369
        %v2399 = vpack.c.bf16 %v2372, %v2371
        %v2400 = vpack.c.bf16 %v2374, %v2373
        %v2401 = vpack.c.bf16 %v2376, %v2375
        %v2402 = vpack.c.bf16 %v2378, %v2377
        %v2403 = vpack.c.bf16 %v2380, %v2379
        %v2404 = vpack.c.bf16 %v2382, %v2381
        %v2405 = vpack.c.bf16 %v2384, %v2383
        %v2406 = vpack.c.bf16 %v2386, %v2385
        %v2407 = vpack.c.bf16 %v2388, %v2387
        %v2408 = vpack.c.bf16 %v2390, %v2389
        %v2409 = vpack.c.bf16 %v2392, %v2391
        %v2410 = vpack.c.bf16 %v2394, %v2393
        %2411 = vmatprep.subr.bf16.mxu0 0
        %2412 = vmatpush1.bf16.msra.mxu0 %v2395
        %2413 = vmatprep.subr.bf16.mxu0 0
        %2414 = vmatpush1.bf16.msra.mxu0 %v2396
        %2415 = vmatprep.subr.bf16.mxu0 0
        %2416 = vmatpush1.bf16.msra.mxu0 %v2397
        %2417 = vmatprep.subr.bf16.mxu0 0
        %2418 = vmatpush1.bf16.msra.mxu0 %v2398
        %2419 = vmatprep.subr.bf16.mxu0 0
        %2420 = vmatpush1.bf16.msra.mxu0 %v2399
        %2421 = vmatprep.subr.bf16.mxu0 0
        %2422 = vmatpush1.bf16.msra.mxu0 %v2400
        %2423 = vmatprep.subr.bf16.mxu0 0
        %2424 = vmatpush1.bf16.msra.mxu0 %v2401
        %2425 = vmatprep.subr.bf16.mxu0 0
        %2426 = vmatpush1.bf16.msra.mxu0 %v2402
        %2427 = vmatprep.subr.bf16.mxu0 0
        %2428 = vmatpush1.bf16.msra.mxu0 %v2403
        %2429 = vmatprep.subr.bf16.mxu0 0
        %2430 = vmatpush1.bf16.msra.mxu0 %v2404
        %2431 = vmatprep.subr.bf16.mxu0 0
        %2432 = vmatpush1.bf16.msra.mxu0 %v2405
        %2433 = vmatprep.subr.bf16.mxu0 0
        %2434 = vmatpush1.bf16.msra.mxu0 %v2406
        %2435 = vmatprep.subr.bf16.mxu0 0
        %2436 = vmatpush1.bf16.msra.mxu0 %v2407
        %2437 = vmatprep.subr.bf16.mxu0 0
        %2438 = vmatpush1.bf16.msra.mxu0 %v2408
        %2439 = vmatprep.subr.bf16.mxu0 0
        %2440 = vmatpush1.bf16.msra.mxu0 %v2409
        %2441 = vmatprep.subr.bf16.mxu0 0
        %2442 = vmatpush1.bf16.msra.mxu0 %v2410
        %2443 = vmatprep.mubr.bf16.mxu0 %v1609
        %2444 = vmatmul.mubr.bf16.gmra.mrb[0].mxu0 %v1608
        %v2445 = vpop.f32.mrb[0].mxu0
        %v2446 = vadd.f32 0.0, %v2445
        %v2447 = vpop.f32.mrb[0].mxu0
        %v2448 = vpop.f32.mrb[0].mxu0
        %v2449 = vadd.f32 0.0, %v2448
        %v2450 = vpop.f32.mrb[0].mxu0
        %2451 = vdwg.mxu0
        %v2452 = vpack.c.bf16 %v2449, %v2446
        %s2453 = scalar_lea.vmem [#allocation11], 64
        %v2454 = vld [vmem:[%s2453] sm:$0xf]
        %v2455 = vld [vmem:[%s2453 + $0x4] sm:$0xf]
        %v2456 = vld [vmem:[%s2453 + $0x8] sm:$0xf]
        %v2457 = vld [vmem:[%s2453 + $0xc] sm:$0xf]
        %v2458 = vld [vmem:[%s2453 + $0x10] sm:$0xf]
        %v2459 = vld [vmem:[%s2453 + $0x14] sm:$0xf]
        %v2460 = vld [vmem:[%s2453 + $0x18] sm:$0xf]
        %v2461 = vld [vmem:[%s2453 + $0x1c] sm:$0xf]
        %v2462 = vld [vmem:[%s2453 + $0x20] sm:$0xf]
        %v2463 = vld [vmem:[%s2453 + $0x24] sm:$0xf]
        %v2464 = vld [vmem:[%s2453 + $0x28] sm:$0xf]
        %v2465 = vld [vmem:[%s2453 + $0x2c] sm:$0xf]
        %v2466 = vld [vmem:[%s2453 + $0x30] sm:$0xf]
        %v2467 = vld [vmem:[%s2453 + $0x34] sm:$0xf]
        %v2468 = vld [vmem:[%s2453 + $0x38] sm:$0xf]
        %v2469 = vld [vmem:[%s2453 + $0x3c] sm:$0xf]
        %v2486 = vunpack.c.l.b16 %v2454
        %v2487 = vunpack.c.l.b16 %v2455
        %v2488 = vunpack.c.l.b16 %v2456
        %v2489 = vunpack.c.l.b16 %v2457
        %v2490 = vunpack.c.l.b16 %v2458
        %v2491 = vunpack.c.l.b16 %v2459
        %v2492 = vunpack.c.l.b16 %v2460
        %v2493 = vunpack.c.l.b16 %v2461
        %v2494 = vunpack.c.l.b16 %v2462
        %v2495 = vunpack.c.l.b16 %v2463
        %v2496 = vunpack.c.l.b16 %v2464
        %v2497 = vunpack.c.l.b16 %v2465
        %v2498 = vunpack.c.l.b16 %v2466
        %v2499 = vunpack.c.l.b16 %v2467
        %v2500 = vunpack.c.l.b16 %v2468
        %v2501 = vunpack.c.l.b16 %v2469
        %v2502 = vpack.c.b16 %v2487, %v2486
        %v2503 = vpack.c.b16 %v2489, %v2488
        %v2504 = vpack.c.b16 %v2491, %v2490
        %v2505 = vpack.c.b16 %v2493, %v2492
        %v2506 = vpack.c.b16 %v2495, %v2494
        %v2507 = vpack.c.b16 %v2497, %v2496
        %v2508 = vpack.c.b16 %v2499, %v2498
        %v2509 = vpack.c.b16 %v2501, %v2500
        %2518 = vmatprep.subr.bf16.mxu0 0
        %2519 = vmatpush1.bf16.msra.mxu0 %v2502
        %2520 = vmatprep.subr.bf16.mxu0 0
        %2521 = vmatpush1.bf16.msra.mxu0 %v2503
        %2522 = vmatprep.subr.bf16.mxu0 0
        %2523 = vmatpush1.bf16.msra.mxu0 %v2504
        %2524 = vmatprep.subr.bf16.mxu0 0
        %2525 = vmatpush1.bf16.msra.mxu0 %v2505
        %2526 = vmatprep.subr.bf16.mxu0 0
        %2527 = vmatpush1.bf16.msra.mxu0 %v2506
        %2528 = vmatprep.subr.bf16.mxu0 0
        %2529 = vmatpush1.bf16.msra.mxu0 %v2507
        %2530 = vmatprep.subr.bf16.mxu0 0
        %2531 = vmatpush1.bf16.msra.mxu0 %v2508
        %2532 = vmatprep.subr.bf16.mxu0 0
        %2533 = vmatpush1.bf16.msra.mxu0 %v2509
        %2534 = vmatprep.subr.bf16.mxu0 0
        %2535 = vmatpush1.bf16.msra.mxu0 0
        %2536 = vmatprep.subr.bf16.mxu0 0
        %2537 = vmatpush1.bf16.msra.mxu0 0
        %2538 = vmatprep.subr.bf16.mxu0 0
        %2539 = vmatpush1.bf16.msra.mxu0 0
        %2540 = vmatprep.subr.bf16.mxu0 0
        %2541 = vmatpush1.bf16.msra.mxu0 0
        %2542 = vmatprep.subr.bf16.mxu0 0
        %2543 = vmatpush1.bf16.msra.mxu0 0
        %2544 = vmatprep.subr.bf16.mxu0 0
        %2545 = vmatpush1.bf16.msra.mxu0 0
        %2546 = vmatprep.subr.bf16.mxu0 0
        %2547 = vmatpush1.bf16.msra.mxu0 0
        %2548 = vmatprep.subr.bf16.mxu0 0
        %2549 = vmatpush1.bf16.msra.mxu0 0
        %2550 = vmatprep.mubr.bf16.mxu0 0
        %2551 = vmatmul.mubr.bf16.gmra.mrb[0].mxu0 %v2452
        %v2552 = vpop.f32.mrb[0].mxu0
        %v2553 = vadd.f32 0.0, %v2552
        %v2554 = vpop.f32.mrb[0].mxu0
        %v2555 = vpop.f32.mrb[0].mxu0
        %v2556 = vadd.f32 0.0, %v2555
        %v2557 = vpop.f32.mrb[0].mxu0
        %2558 = vdwg.mxu0
        %v2575 = vunpack.c.l.b16 %v1654
        %v2576 = vunpack.c.l.b16 %v1655
        %v2577 = vunpack.c.l.b16 %v1656
        %v2578 = vunpack.c.l.b16 %v1657
        %v2579 = vunpack.c.l.b16 %v1658
        %v2580 = vunpack.c.l.b16 %v1659
        %v2581 = vunpack.c.l.b16 %v1660
        %v2582 = vunpack.c.l.b16 %v1661
        %v2583 = vunpack.c.l.b16 %v1662
        %v2584 = vunpack.c.l.b16 %v1663
        %v2585 = vunpack.c.l.b16 %v1664
        %v2586 = vunpack.c.l.b16 %v1665
        %v2587 = vunpack.c.l.b16 %v1666
        %v2588 = vunpack.c.l.b16 %v1667
        %v2589 = vunpack.c.l.b16 %v1668
        %v2590 = vunpack.c.l.b16 %v1669
        %v2591 = vpack.c.b16 %v2576, %v2575
        %v2592 = vpack.c.b16 %v2578, %v2577
        %v2593 = vpack.c.b16 %v2580, %v2579
        %v2594 = vpack.c.b16 %v2582, %v2581
        %v2595 = vpack.c.b16 %v2584, %v2583
        %v2596 = vpack.c.b16 %v2586, %v2585
        %v2597 = vpack.c.b16 %v2588, %v2587
        %v2598 = vpack.c.b16 %v2590, %v2589
        %2607 = vmatprep.subr.bf16.mxu0 0
        %2608 = vmatpush1.bf16.msra.mxu0 %v2591
        %2609 = vmatprep.subr.bf16.mxu0 0
        %2610 = vmatpush1.bf16.msra.mxu0 %v2592
        %2611 = vmatprep.subr.bf16.mxu0 0
        %2612 = vmatpush1.bf16.msra.mxu0 %v2593
        %2613 = vmatprep.subr.bf16.mxu0 0
        %2614 = vmatpush1.bf16.msra.mxu0 %v2594
        %2615 = vmatprep.subr.bf16.mxu0 0
        %2616 = vmatpush1.bf16.msra.mxu0 %v2595
        %2617 = vmatprep.subr.bf16.mxu0 0
        %2618 = vmatpush1.bf16.msra.mxu0 %v2596
        %2619 = vmatprep.subr.bf16.mxu0 0
        %2620 = vmatpush1.bf16.msra.mxu0 %v2597
        %2621 = vmatprep.subr.bf16.mxu0 0
        %2622 = vmatpush1.bf16.msra.mxu0 %v2598
        %2623 = vmatprep.subr.bf16.mxu0 0
        %2624 = vmatpush1.bf16.msra.mxu0 0
        %2625 = vmatprep.subr.bf16.mxu0 0
        %2626 = vmatpush1.bf16.msra.mxu0 0
        %2627 = vmatprep.subr.bf16.mxu0 0
        %2628 = vmatpush1.bf16.msra.mxu0 0
        %2629 = vmatprep.subr.bf16.mxu0 0
        %2630 = vmatpush1.bf16.msra.mxu0 0
        %2631 = vmatprep.subr.bf16.mxu0 0
        %2632 = vmatpush1.bf16.msra.mxu0 0
        %2633 = vmatprep.subr.bf16.mxu0 0
        %2634 = vmatpush1.bf16.msra.mxu0 0
        %2635 = vmatprep.subr.bf16.mxu0 0
        %2636 = vmatpush1.bf16.msra.mxu0 0
        %2637 = vmatprep.subr.bf16.mxu0 0
        %2638 = vmatpush1.bf16.msra.mxu0 0
        %2639 = vmatprep.mubr.bf16.mxu0 0
        %2640 = vmatmul.mubr.bf16.gmra.mrb[0].mxu0 %v1653
        %v2641 = vpop.f32.mrb[0].mxu0
        %v2642 = vadd.f32 %v2553, %v2641
        %v2643 = vpop.f32.mrb[0].mxu0
        %v2644 = vpop.f32.mrb[0].mxu0
        %v2645 = vadd.f32 %v2556, %v2644
        %v2646 = vpop.f32.mrb[0].mxu0
        %2647 = vdwg.mxu0
        %v2648 = vld [vmem:[%s8] sm:$0x1]
        %v2650 = vlaneseq
        %v2651 = vshrl.u32 %v2650, 7
        %v2652 = vsub.s32 0, %v2651
        %v2653 = vrot.slane %v2648, %v2652
        %v2655 = vadd.f32 %v2642, %v2653
        %v2656 = vadd.f32 %v2645, %v2653
        %v2657 = vmax.f32 %v2655, 0.0
        %v2658 = vmax.f32 %v2656, 0.0
        %v2659 = vpack.c.bf16 %v2658, %v2657
        %v2660 = vld [vmem:[#allocation13] sm:$0xf]
        %v2661 = vld [vmem:[#allocation13 + $0x4] sm:$0xf]
        %v2662 = vld [vmem:[#allocation13 + $0x8] sm:$0xf]
        %v2663 = vld [vmem:[#allocation13 + $0xc] sm:$0xf]
        %v2664 = vld [vmem:[#allocation13 + $0x10] sm:$0xf]
        %v2665 = vld [vmem:[#allocation13 + $0x14] sm:$0xf]
        %v2666 = vld [vmem:[#allocation13 + $0x18] sm:$0xf]
        %v2667 = vld [vmem:[#allocation13 + $0x1c] sm:$0xf]
        %v2668 = vld [vmem:[#allocation13 + $0x20] sm:$0xf]
        %v2669 = vld [vmem:[#allocation13 + $0x24] sm:$0xf]
        %v2670 = vld [vmem:[#allocation13 + $0x28] sm:$0xf]
        %v2671 = vld [vmem:[#allocation13 + $0x2c] sm:$0xf]
        %v2672 = vld [vmem:[#allocation13 + $0x30] sm:$0xf]
        %v2673 = vld [vmem:[#allocation13 + $0x34] sm:$0xf]
        %v2674 = vld [vmem:[#allocation13 + $0x38] sm:$0xf]
        %v2675 = vld [vmem:[#allocation13 + $0x3c] sm:$0xf]
        %v2676 = vld [vmem:[%s10] sm:$0x1]
        %v2678 = vlaneseq
        %v2679 = vshrl.u32 %v2678, 7
        %v2680 = vsub.s32 0, %v2679
        %v2681 = vrot.slane %v2676, %v2680
        %v2699 = vunpack.c.l.b16 %v2660
        %v2700 = vunpack.c.l.b16 %v2661
        %v2701 = vunpack.c.l.b16 %v2662
        %v2702 = vunpack.c.l.b16 %v2663
        %v2703 = vunpack.c.l.b16 %v2664
        %v2704 = vunpack.c.l.b16 %v2665
        %v2705 = vunpack.c.l.b16 %v2666
        %v2706 = vunpack.c.l.b16 %v2667
        %v2707 = vunpack.c.l.b16 %v2668
        %v2708 = vunpack.c.l.b16 %v2669
        %v2709 = vunpack.c.l.b16 %v2670
        %v2710 = vunpack.c.l.b16 %v2671
        %v2711 = vunpack.c.l.b16 %v2672
        %v2712 = vunpack.c.l.b16 %v2673
        %v2713 = vunpack.c.l.b16 %v2674
        %v2714 = vunpack.c.l.b16 %v2675
        %v2715 = vpack.c.b16 %v2700, %v2699
        %v2716 = vpack.c.b16 %v2702, %v2701
        %v2717 = vpack.c.b16 %v2704, %v2703
        %v2718 = vpack.c.b16 %v2706, %v2705
        %v2719 = vpack.c.b16 %v2708, %v2707
        %v2720 = vpack.c.b16 %v2710, %v2709
        %v2721 = vpack.c.b16 %v2712, %v2711
        %v2722 = vpack.c.b16 %v2714, %v2713
        %2731 = vmatprep.subr.bf16.mxu0 0
        %2732 = vmatpush1.bf16.msra.mxu0 %v2715
        %2733 = vmatprep.subr.bf16.mxu0 0
        %2734 = vmatpush1.bf16.msra.mxu0 %v2716
        %2735 = vmatprep.subr.bf16.mxu0 0
        %2736 = vmatpush1.bf16.msra.mxu0 %v2717
        %2737 = vmatprep.subr.bf16.mxu0 0
        %2738 = vmatpush1.bf16.msra.mxu0 %v2718
        %2739 = vmatprep.subr.bf16.mxu0 0
        %2740 = vmatpush1.bf16.msra.mxu0 %v2719
        %2741 = vmatprep.subr.bf16.mxu0 0
        %2742 = vmatpush1.bf16.msra.mxu0 %v2720
        %2743 = vmatprep.subr.bf16.mxu0 0
        %2744 = vmatpush1.bf16.msra.mxu0 %v2721
        %2745 = vmatprep.subr.bf16.mxu0 0
        %2746 = vmatpush1.bf16.msra.mxu0 %v2722
        %2747 = vmatprep.subr.bf16.mxu0 0
        %2748 = vmatpush1.bf16.msra.mxu0 0
        %2749 = vmatprep.subr.bf16.mxu0 0
        %2750 = vmatpush1.bf16.msra.mxu0 0
        %2751 = vmatprep.subr.bf16.mxu0 0
        %2752 = vmatpush1.bf16.msra.mxu0 0
        %2753 = vmatprep.subr.bf16.mxu0 0
        %2754 = vmatpush1.bf16.msra.mxu0 0
        %2755 = vmatprep.subr.bf16.mxu0 0
        %2756 = vmatpush1.bf16.msra.mxu0 0
        %2757 = vmatprep.subr.bf16.mxu0 0
        %2758 = vmatpush1.bf16.msra.mxu0 0
        %2759 = vmatprep.subr.bf16.mxu0 0
        %2760 = vmatpush1.bf16.msra.mxu0 0
        %2761 = vmatprep.subr.bf16.mxu0 0
        %2762 = vmatpush1.bf16.msra.mxu0 0
        %2763 = vmatprep.mubr.bf16.mxu0 0
        %2764 = vmatmul.mubr.bf16.gmra.mrb[0].mxu0 %v2659
        %v2765 = vpop.f32.mrb[0].mxu0
        %v2766 = vadd.f32 %v2681, %v2765
        %v2767 = vpop.f32.mrb[0].mxu0
        %v2768 = vpop.f32.mrb[0].mxu0
        %v2769 = vadd.f32 %v2681, %v2768
        %v2770 = vpop.f32.mrb[0].mxu0
        %2771 = vdwg.mxu0
        %2772 = vst [vmem:[%s539] sm:$0xff] %v2766
        %2773 = vst [vmem:[%s539 + $0x8] sm:$0xff] %v2769
        %s2774 = sand.u32 %s287, 1
        %s2775 = scalar_lea.sflag [#allocation4], %s2774
        %s2776 = sand.u32 %s287, 1
        %s2777 = smul.addr %s2776, 16
        %s2778 = scalar_lea.vmem [#allocation14], %s2777
        // Predicated region
        $region93: #{tpu_custom_call.1} parent=63 // pred_check
          %p2779 = pneg %p297
        $region94: #{tpu_custom_call.1} parent=63 // pred_check_branch
          %2781 = sbr.rel (%p2779) target = $region96
        $region95: #{tpu_custom_call.1} parent=63 // pred_region
          %s2782 = smul.u32 2, %s33
          %s2784 = ssub.s32 256, 256
          %2785 = vsyncadd %s2775, %s2784
          %s2786 = smul.addr %s2782, 128
          %s2787 = scalar_lea.hbm %s11, %s2786
          %s2788 = sshll.u32 %s2778, 4
          %s2789 = int_to_ptr.vmem [resolvable:$true] %s2788
          %2794 = dma.vmem_to_hbm [thread:$0]  %s2789, 256, %s2787, %s2775, 128, 128, 8
        $region96: #{tpu_custom_call.1} parent=63 // pred_fallthru
          _
      $region64: #{tpu_custom_call.1} parent=5 // pred_fallthru
        _
      %p2795 = scmp.le.s32.totalorder 2, %s28
      // Predicated region
      $region97: #{tpu_custom_call.1} parent=5 // pred_check
        %p2796 = pneg %p2795
      $region98: #{tpu_custom_call.1} parent=5 // pred_check_branch
        %2798 = sbr.rel (%p2796) target = $region100
      $region99: #{tpu_custom_call.1} parent=5 // pred_region
        %s2799 = ssub.s32 %s28, 2
        // Predicated region
        $region101: #{tpu_custom_call.1} parent=99 // pred_check
          %p2800 = pneg %p303
        $region102: #{tpu_custom_call.1} parent=99 // pred_check_branch
          %2802 = sbr.rel (%p2800) target = $region104
        $region103: #{tpu_custom_call.1} parent=99 // pred_region
          %s2803 = sand.u32 %s288, 1
          %s2804 = scalar_lea.sflag [#allocation4], %s2803
          %s2805 = sand.u32 %s288, 1
          %s2806 = smul.addr %s2805, 16
          %s2807 = scalar_lea.vmem [#allocation14], %s2806
          %2808 = dma.done %s2804, 256
        $region104: #{tpu_custom_call.1} parent=99 // pred_fallthru
          _
      $region100: #{tpu_custom_call.1} parent=5 // pred_fallthru
        _
    $region6: #{tpu_custom_call.1} parent=1 // loop_footer
      %s32 = sadd.s32 1, %s28
    $region7: #{tpu_custom_call.1} parent=1 // loop_footer_branch
      %27 = sbr.rel target = $region3
    $region8: #{tpu_custom_call.1} parent=1 // loop_exit
      _
    %2809 = vsyncpa [#allocation3], 1
    %s2810 = scalar_lea.sflag [#allocation3], 1
    %2811 = vsyncpa %s2810, 1
    %2812 = vsyncpa [#allocation6], 1
    %s2813 = scalar_lea.sflag [#allocation6], 1
    %2814 = vsyncpa %s2813, 1
    %2815 = vsyncpa [#allocation9], 1
    %2816 = vsyncpa [#allocation12], 1
    %2817 = vsyncpa [#allocation4], 1
    %s2818 = scalar_lea.sflag [#allocation4], 1
    %2819 = vsyncpa %s2818, 1

</llo_original>
